<compile_context>
chip_gen: v5e
topology: v5e:2x2
jax: 0.10.0
libtpu: 0.0.40
codegen_flags: <defaults>
</compile_context>

<pallas_src>
import functools

import numpy as np
import jax
import jax.numpy as jnp
from jax import lax
from jax.experimental import pallas as pl
from jax.experimental.pallas import tpu as pltpu

# ----------------------------- config ---------------------------------
N_ITEMS = 50
HIDDEN = 32          # config['hidden_units']
NUM_HEADS = 2        # config['num_heads']
NUM_BLOCKS = 2       # config['num_blocks']
MAXLEN = 7
SEQ_LEN = MAXLEN + 1  # max_seq_len = maxlen + 1
BATCH = 2
LN_EPS = 1e-6


# --------------------------- math helpers ------------------------------
def _layer_norm(x, g, b, eps=LN_EPS):
    mu = jnp.mean(x, axis=-1, keepdims=True)
    var = jnp.mean((x - mu) ** 2, axis=-1, keepdims=True)
    return (x - mu) * lax.rsqrt(var + eps) * g + b


def _gelu(x):
    # GELU tanh approximation used by the reference (BERT-style GELU module).
    return 0.5 * x * (1.0 + jnp.tanh(0.7978845608028654 * (x + 0.044715 * x * x * x)))


# ----------------------------- kernel ----------------------------------
def cl4rec_kernel(ids_ref, nids_ref, mask_ref, emb_ref, vec_ref, w_ref, w2_ref,
                  prec_ref, tpos_ref, tneg_ref, cat_ref,
                  *, num_heads, num_layers, seq_len, batch):
    L = seq_len
    B = batch
    BL = B * L
    V1, D = emb_ref.shape
    NL = num_layers
    dk = D // num_heads
    inv_temp = 1.0 / (float(dk) ** 0.5)

    # ---- fused embedding gathers: one-hot (BL, V1) @ table (V1, D) on MXU ----
    col = lax.broadcasted_iota(jnp.int32, (BL, V1), 1)
    emb_tbl = emb_ref[...]
    x = jnp.dot((ids_ref[...] == col).astype(jnp.float32), emb_tbl,
                preferred_element_type=jnp.float32)          # input embs  (BL, D)
    xneg = jnp.dot((nids_ref[...] == col).astype(jnp.float32), emb_tbl,
                   preferred_element_type=jnp.float32)        # neg embs    (BL, D)

    # ---- attention bias: init-time structural skeleton + runtime key padding.
    # struct in {0 (in-batch, causal), -1e9 (in-batch, disallowed), -2e9
    # (cross-batch)}; padded keys demote allowed entries to -1e9.  Cross-batch
    # entries always underflow to exactly 0 after the row-max subtraction, and
    # fully-padded query rows reproduce the reference's uniform softmax.
    sb = BL + 2 + 6 * NL
    struct = vec_ref[sb:sb + BL, 0:BL]                        # (BL, BL)
    key_ok = mask_ref[...] != 0.0                             # (1, BL)
    att_bias = jnp.where(key_ok, struct, jnp.minimum(struct, -1e9))

    # ---- user encoder ----
    pos = vec_ref[0:BL, :]                                    # pre-tiled pos emb
    h = _layer_norm(x + pos, vec_ref[BL:BL + 1, :], vec_ref[BL + 1:BL + 2, :])

    for l in range(NL):                                       # static unroll
        wl = w_ref[l]                                         # (D+1, 8D) packed
        wqkv = wl[0:D, 0:3 * D]                               # fused Q|K|V
        wo = wl[0:D, 3 * D:4 * D]
        w1 = wl[0:D, 4 * D:8 * D]
        bqkv = wl[D:D + 1, 0:3 * D]
        b1 = wl[D:D + 1, 4 * D:8 * D]

        base = BL + 2 + 6 * l
        bo = vec_ref[base:base + 1, :]
        ln1_g = vec_ref[base + 1:base + 2, :]
        ln1_b = vec_ref[base + 2:base + 3, :]
        ln2_g = vec_ref[base + 3:base + 4, :]
        ln2_b = vec_ref[base + 4:base + 5, :]
        b2 = vec_ref[base + 5:base + 6, :]

        # single lane-dense projection for Q, K, V over all B*L rows
        qkv = jnp.dot(h, wqkv, preferred_element_type=jnp.float32) + bqkv

        ctx = []
        for hh in range(num_heads):                           # static unroll
            q_h = qkv[:, hh * dk:(hh + 1) * dk] * inv_temp
            k_h = qkv[:, D + hh * dk:D + (hh + 1) * dk]
            v_h = qkv[:, 2 * D + hh * dk:2 * D + (hh + 1) * dk]
            s = lax.dot_general(q_h, k_h, (((1,), (1,)), ((), ())),
                                preferred_element_type=jnp.float32) + att_bias
            s = s - jnp.max(s, axis=-1, keepdims=True)
            p = jnp.exp(s)
            # approx reciprocal (EUP slot); error ~1e-3 relative, within tolerance
            p = p * pl.reciprocal(jnp.sum(p, axis=-1, keepdims=True), approx=True)
            ctx.append(jnp.dot(p, v_h, preferred_element_type=jnp.float32))
        ctx = jnp.concatenate(ctx, axis=-1)                   # (BL, D) head concat
        attn = jnp.dot(ctx, wo, preferred_element_type=jnp.float32) + bo

        h = _layer_norm(attn + h, ln1_g, ln1_b)
        u = _gelu(jnp.dot(h, w1, preferred_element_type=jnp.float32) + b1)
        ff = jnp.dot(u, w2_ref[l], preferred_element_type=jnp.float32) + b2
        h = _layer_norm(ff + h, ln2_g, ln2_b)

    # ---- fused module outputs (static slices, per-batch masked stores) ----
    # TODO(synk): outputs stay as small masked (<=8,64) stores; a lane-dense
    # relayout is not worth the XLU cost at this size.
    for b in range(B):
        r = b * L
        prec_ref[b, :, :] = h[r:r + L - 1, :]                 # prec_vec[:, :-1, :]
        tpos_ref[b, :, :] = x[r + 1:r + L, :]                 # input_embs[:, 1:, :]
        tneg_ref[b, :, :] = xneg[r:r + L - 1, :]              # neg_embs[:, :-1, :]
        cat_ref[b, :, 0:D] = x[r:r + L, :]                    # concat(input_embs,
        cat_ref[b, :, D:2 * D] = h[r:r + L, :]                #        prec_vec)


# ----------------------- one-time param fusion --------------------------
def prepare_fused_params(params, batch):
    """Hoisted out of the forward path: pack weights/biases/LN params/pos emb
    and the structural attention-bias skeleton into 4 arrays (done once)."""
    D, NL, L = HIDDEN, NUM_BLOCKS, SEQ_LEN
    BL = batch * L
    assert BL <= D, "structural bias rows are packed into the D-lane vec array"

    # (NL, D+1, 8D): rows 0..D-1 = [Wqkv | Wo | FFN_W1]; row D = [bqkv | 0 | ffn_b1]
    wqkv = jnp.concatenate([params["attn_w"][:, 0], params["attn_w"][:, 1],
                            params["attn_w"][:, 2]], axis=-1)           # (NL, D, 3D)
    w_rows = jnp.concatenate([wqkv, params["attn_w"][:, 3],
                              params["ffn_w1"]], axis=-1)               # (NL, D, 8D)
    bqkv = jnp.concatenate([params["attn_b"][:, 0], params["attn_b"][:, 1],
                            params["attn_b"][:, 2]], axis=-1)           # (NL, 3D)
    bias_row = jnp.concatenate([bqkv, jnp.zeros((NL, D), jnp.float32),
                                params["ffn_b1"]], axis=-1)             # (NL, 8D)
    wfused = jnp.concatenate([w_rows, bias_row[:, None, :]], axis=1)

    # (BL + 2 + 6*NL + BL, D): pos emb (tiled), ln0, per-layer row vectors,
    # structural attention-bias skeleton (lanes [0:BL]).
    rows = [jnp.tile(params["pos_emb"], (batch, 1)), params["ln0"]]
    for l in range(NL):
        rows.append(params["attn_b"][l, 3:4])     # bo
        rows.append(params["ln_w"][l])            # ln1_g, ln1_b, ln2_g, ln2_b
        rows.append(params["ffn_b2"][l:l + 1])    # ffn_b2
    r = np.arange(BL)
    same = (r[:, None] // L) == (r[None, :] // L)
    causal = (r[None, :] % L) <= (r[:, None] % L)
    struct = np.where(same & causal, 0.0,
                      np.where(same, -1e9, -2e9)).astype(np.float32)    # (BL, BL)
    struct_pad = np.zeros((BL, D), np.float32)
    struct_pad[:, :BL] = struct
    rows.append(jnp.asarray(struct_pad))
    vec = jnp.concatenate(rows, axis=0)

    return dict(item_emb=params["item_emb"], wfused=wfused,
                w2=params["ffn_w2"], vec=vec)


# ----------------------------- wrapper ----------------------------------
def cl4rec_pallas(ids, neg_ids, mask, fused, B, L):
    D = fused["item_emb"].shape[1]
    NL = fused["wfused"].shape[0]
    BL = B * L

    kernel = functools.partial(cl4rec_kernel, num_heads=NUM_HEADS,
                               num_layers=NL, seq_len=L, batch=B)

    def fs(shape):  # full-array block, single grid step
        nd = len(shape)
        return pl.BlockSpec(tuple(shape), lambda i, _nd=nd: (0,) * _nd)

    out_shapes = (
        jax.ShapeDtypeStruct((B, L - 1, D), jnp.float32),   # prec_vec[:, :-1, :]
        jax.ShapeDtypeStruct((B, L - 1, D), jnp.float32),   # target_pos_embs
        jax.ShapeDtypeStruct((B, L - 1, D), jnp.float32),   # target_neg_embs
        jax.ShapeDtypeStruct((B, L, 2 * D), jnp.float32),   # concat(input, prec)
    )
    out_specs = (fs((B, L - 1, D)), fs((B, L - 1, D)),
                 fs((B, L - 1, D)), fs((B, L, 2 * D)))

    return pl.pallas_call(
        kernel,
        out_shape=out_shapes,
        grid_spec=pltpu.PrefetchScalarGridSpec(
            num_scalar_prefetch=0,
            grid=(1,),
            in_specs=[
                fs((BL, 1)),                        # interaction ids (int32)
                fs((BL, 1)),                        # negative ids (int32)
                fs((1, BL)),                        # log mask
                fs(fused["item_emb"].shape),        # embedding table
                fs(fused["vec"].shape),             # packed row params + bias skeleton
                fs(fused["wfused"].shape),          # packed weights + wide biases
                fs(fused["w2"].shape),              # FFN W2
            ],
            out_specs=out_specs,
        ),
        compiler_params=pltpu.CompilerParams(dimension_semantics=("arbitrary",)),
    )(ids, neg_ids, mask, fused["item_emb"], fused["vec"],
      fused["wfused"], fused["w2"])


# -------------------------- model forward ------------------------------
def basic_cl4rec_forward(interaction_list, interaction_mask, neg_list, fused):
    """Mirrors BasicCL4rec.forward (inference: dropout = identity).
    Everything (gathers, encoder, slicing, concat) runs in one pallas_call."""
    B, L = interaction_list.shape
    ids = interaction_list.astype(jnp.int32).reshape(B * L, 1)
    nids = neg_list.astype(jnp.int32).reshape(B * L, 1)
    mask = interaction_mask.astype(jnp.float32).reshape(1, B * L)
    return cl4rec_pallas(ids, nids, mask, fused, B, L)


# ------------------------- pure-JAX reference --------------------------
def user_encoder_ref(x, mask, params):
    B, L, D = x.shape
    H = NUM_HEADS
    NL = params["attn_w"].shape[0]
    dk = D // H
    causal = jnp.arange(L)[None, :] <= jnp.arange(L)[:, None]      # [L, L]
    key_ok = (mask != 0.0)[:, None, :]                             # [B, 1, L]
    bias = jnp.where(causal[None] & key_ok, 0.0, -1e9)[:, None]    # [B, 1, L, L]

    h = _layer_norm(x + params["pos_emb"][None], params["ln0"][0], params["ln0"][1])
    for l in range(NL):
        wq, wk, wv, wo = [params["attn_w"][l, i] for i in range(4)]
        bq, bk, bv, bo = [params["attn_b"][l, i] for i in range(4)]
        lnp = params["ln_w"][l]
        q = (h @ wq + bq).reshape(B, L, H, dk).transpose(0, 2, 1, 3)
        k = (h @ wk + bk).reshape(B, L, H, dk).transpose(0, 2, 1, 3)
        v = (h @ wv + bv).reshape(B, L, H, dk).transpose(0, 2, 1, 3)
        s = jnp.einsum("bhqd,bhkd->bhqk", q / (dk ** 0.5), k) + bias
        p = jax.nn.softmax(s, axis=-1)
        ctx = jnp.einsum("bhqk,bhkd->bhqd", p, v).transpose(0, 2, 1, 3).reshape(B, L, D)
        h = _layer_norm(ctx @ wo + bo + h, lnp[0], lnp[1])
        u = _gelu(h @ params["ffn_w1"][l] + params["ffn_b1"][l])
        ff = u @ params["ffn_w2"][l] + params["ffn_b2"][l]
        h = _layer_norm(ff + h, lnp[2], lnp[3])
    return h


# --------------------------- parameter init ----------------------------
def init_params(key):
    D, NL, L = HIDDEN, NUM_BLOCKS, SEQ_LEN
    ks = jax.random.split(key, 10)
    s = 0.02
    item_emb = jax.random.normal(ks[0], (N_ITEMS + 1, D), jnp.float32) * s
    item_emb = item_emb.at[0].set(0.0)                    # padding_idx=0
    pos_emb = jax.random.normal(ks[1], (L, D), jnp.float32) * s
    ln0 = jnp.stack([1.0 + 0.1 * jax.random.normal(ks[2], (D,)),
                     0.1 * jax.random.normal(ks[3], (D,))]).astype(jnp.float32)
    attn_w = jax.random.normal(ks[4], (NL, 4, D, D), jnp.float32) * s
    attn_b = 0.01 * jax.random.normal(ks[5], (NL, 4, D), jnp.float32)
    ln_g = 1.0 + 0.1 * jax.random.normal(ks[6], (NL, 2, D), jnp.float32)
    ln_b = 0.1 * jax.random.normal(ks[7], (NL, 2, D), jnp.float32)
    # order per layer: [ln1_gamma, ln1_beta, ln2_gamma, ln2_beta]
    ln_w = jnp.stack([ln_g[:, 0], ln_b[:, 0], ln_g[:, 1], ln_b[:, 1]], axis=1)
    ffn_w1 = jax.random.normal(ks[8], (NL, D, 4 * D), jnp.float32) * s
    ffn_b1 = jnp.zeros((NL, 4 * D), jnp.float32)
    ffn_w2 = jax.random.normal(ks[9], (NL, 4 * D, D), jnp.float32) * s
    ffn_b2 = jnp.zeros((NL, D), jnp.float32)
    return dict(item_emb=item_emb, pos_emb=pos_emb, ln0=ln0,
                attn_w=attn_w, attn_b=attn_b, ln_w=ln_w,
                ffn_w1=ffn_w1, ffn_b1=ffn_b1, ffn_w2=ffn_w2, ffn_b2=ffn_b2)


# ------------------------------- main -----------------------------------
if __name__ == "__main__":
    key = jax.random.PRNGKey(0)
    k_items, k_neg, k_params = jax.random.split(key, 3)

    interaction_list = jax.random.randint(k_items, (BATCH, SEQ_LEN), 1, N_ITEMS + 1)
    interaction_list = interaction_list.at[0, :3].set(0)      # some left-padding
    interaction_mask = (interaction_list != 0).astype(jnp.float32)
    neg_list = jax.random.randint(k_neg, (BATCH, SEQ_LEN), 1, N_ITEMS + 1)

    params = init_params(k_params)
    fused = prepare_fused_params(params, BATCH)   # one-time layout fusion

    fwd = jax.jit(basic_cl4rec_forward)
    outs = jax.block_until_ready(fwd(interaction_list, interaction_mask,
                                     neg_list, fused))
    prec_trunc, tgt_pos, tgt_neg, concat_out = outs

    # correctness check against a pure-JAX reference built from the raw params
    input_embs_all = params["item_emb"][interaction_list]
    neg_embs_all = params["item_emb"][neg_list]
    prec_ref = user_encoder_ref(input_embs_all, interaction_mask, params)

    assert prec_trunc.shape == (BATCH, SEQ_LEN - 1, HIDDEN)
    assert tgt_pos.shape == (BATCH, SEQ_LEN - 1, HIDDEN)
    assert tgt_neg.shape == (BATCH, SEQ_LEN - 1, HIDDEN)
    assert concat_out.shape == (BATCH, SEQ_LEN, 2 * HIDDEN)
    assert jnp.allclose(tgt_pos, input_embs_all[:, 1:, :], atol=1e-5, rtol=1e-5)
    assert jnp.allclose(tgt_neg, neg_embs_all[:, :-1, :], atol=1e-5, rtol=1e-5)
    assert jnp.allclose(concat_out[:, :, :HIDDEN], input_embs_all, atol=1e-5, rtol=1e-5)
    assert jnp.allclose(prec_trunc, prec_ref[:, :-1, :], atol=3e-3, rtol=3e-3)
    assert jnp.allclose(concat_out[:, :, HIDDEN:], prec_ref, atol=3e-3, rtol=3e-3)

    print("KERNEL_OK")
</pallas_src>

<mosaic_0001>
module attributes {stable_mosaic.version = 11 : i64} {
  func.func @cl4rec_kernel(%arg0: i32, %arg1: memref<16x1xi32, #tpu.memory_space<vmem>>, %arg2: memref<16x1xi32, #tpu.memory_space<vmem>>, %arg3: memref<1x16xf32, #tpu.memory_space<vmem>>, %arg4: memref<51x32xf32, #tpu.memory_space<vmem>>, %arg5: memref<46x32xf32, #tpu.memory_space<vmem>>, %arg6: memref<2x33x256xf32, #tpu.memory_space<vmem>>, %arg7: memref<2x128x32xf32, #tpu.memory_space<vmem>>, %arg8: memref<2x7x32xf32, #tpu.memory_space<vmem>>, %arg9: memref<2x7x32xf32, #tpu.memory_space<vmem>>, %arg10: memref<2x7x32xf32, #tpu.memory_space<vmem>>, %arg11: memref<2x8x64xf32, #tpu.memory_space<vmem>>) attributes {dimension_semantics = [#tpu.dimension_semantics<arbitrary>], iteration_bounds = array<i64: 1>, scalar_prefetch = 0 : i64, scratch_operands = 0 : i64, tpu.core_type = #tpu.core_type<tc>, window_params = [{pipeline_mode = #tpu.pipeline_mode<synchronous>, transform_indices = @transform_0, window_bounds = array<i64: 16, 1>}, {pipeline_mode = #tpu.pipeline_mode<synchronous>, transform_indices = @transform_1, window_bounds = array<i64: 16, 1>}, {pipeline_mode = #tpu.pipeline_mode<synchronous>, transform_indices = @transform_2, window_bounds = array<i64: 1, 16>}, {pipeline_mode = #tpu.pipeline_mode<synchronous>, transform_indices = @transform_3, window_bounds = array<i64: 51, 32>}, {pipeline_mode = #tpu.pipeline_mode<synchronous>, transform_indices = @transform_4, window_bounds = array<i64: 46, 32>}, {pipeline_mode = #tpu.pipeline_mode<synchronous>, transform_indices = @transform_5, window_bounds = array<i64: 2, 33, 256>}, {pipeline_mode = #tpu.pipeline_mode<synchronous>, transform_indices = @transform_6, window_bounds = array<i64: 2, 128, 32>}, {pipeline_mode = #tpu.pipeline_mode<synchronous>, transform_indices = @transform_7, window_bounds = array<i64: 2, 7, 32>}, {pipeline_mode = #tpu.pipeline_mode<synchronous>, transform_indices = @transform_8, window_bounds = array<i64: 2, 7, 32>}, {pipeline_mode = #tpu.pipeline_mode<synchronous>, transform_indices = @transform_9, window_bounds = array<i64: 2, 7, 32>}, {pipeline_mode = #tpu.pipeline_mode<synchronous>, transform_indices = @transform_10, window_bounds = array<i64: 2, 8, 64>}]} {
    %0 = tpu.iota {dimensions = array<i32: 1>} : vector<16x51xi32>
    %c0 = arith.constant 0 : index
    %c0_0 = arith.constant 0 : index
    %1 = vector.load %arg4[%c0, %c0_0] : memref<51x32xf32, #tpu.memory_space<vmem>>, vector<51x32xf32>
    %c0_1 = arith.constant 0 : index
    %c0_2 = arith.constant 0 : index
    %2 = vector.load %arg1[%c0_1, %c0_2] : memref<16x1xi32, #tpu.memory_space<vmem>>, vector<16x1xi32>
    %3 = vector.broadcast %2 : vector<16x1xi32> to vector<16x51xi32>
    %4 = arith.cmpi eq, %3, %0 : vector<16x51xi32>
    %5 = arith.extui %4 : vector<16x51xi1> to vector<16x51xi32>
    %6 = arith.sitofp %5 : vector<16x51xi32> to vector<16x51xf32>
    %cst = arith.constant dense<0.000000e+00> : vector<16x32xf32>
    %7 = tpu.matmul %6, %1, %cst {dimension_numbers = #tpu.dot_dimension_numbers<[1], [0], [0], [1], [0, 0, 1, 1], [], []>} : vector<16x51xf32>, vector<51x32xf32>, vector<16x32xf32> -> vector<16x32xf32>
    %c0_3 = arith.constant 0 : index
    %c0_4 = arith.constant 0 : index
    %8 = vector.load %arg2[%c0_3, %c0_4] : memref<16x1xi32, #tpu.memory_space<vmem>>, vector<16x1xi32>
    %9 = vector.broadcast %8 : vector<16x1xi32> to vector<16x51xi32>
    %10 = arith.cmpi eq, %9, %0 : vector<16x51xi32>
    %11 = arith.extui %10 : vector<16x51xi1> to vector<16x51xi32>
    %12 = arith.sitofp %11 : vector<16x51xi32> to vector<16x51xf32>
    %cst_5 = arith.constant dense<0.000000e+00> : vector<16x32xf32>
    %13 = tpu.matmul %12, %1, %cst_5 {dimension_numbers = #tpu.dot_dimension_numbers<[1], [0], [0], [1], [0, 0, 1, 1], [], []>} : vector<16x51xf32>, vector<51x32xf32>, vector<16x32xf32> -> vector<16x32xf32>
    %c30 = arith.constant 30 : index
    %c0_6 = arith.constant 0 : index
    %14 = vector.load %arg5[%c30, %c0_6] : memref<46x32xf32, #tpu.memory_space<vmem>>, vector<16x16xf32>
    %c0_7 = arith.constant 0 : index
    %c0_8 = arith.constant 0 : index
    %15 = vector.load %arg3[%c0_7, %c0_8] : memref<1x16xf32, #tpu.memory_space<vmem>>, vector<1x16xf32>
    %cst_9 = arith.constant 0.000000e+00 : f32
    %16 = vector.broadcast %cst_9 : f32 to vector<1x16xf32>
    %17 = arith.cmpf one, %15, %16 : vector<1x16xf32>
    %cst_10 = arith.constant -1.000000e+09 : f32
    %18 = vector.broadcast %cst_10 : f32 to vector<16x16xf32>
    %19 = arith.minimumf %14, %18 : vector<16x16xf32>
    %20 = vector.shape_cast %17 : vector<1x16xi1> to vector<1x16xi1>
    %21 = vector.broadcast %20 : vector<1x16xi1> to vector<16x16xi1>
    %22 = arith.select %21, %14, %19 : vector<16x16xi1>, vector<16x16xf32>
    %c0_11 = arith.constant 0 : index
    %c0_12 = arith.constant 0 : index
    %23 = vector.load %arg5[%c0_11, %c0_12] : memref<46x32xf32, #tpu.memory_space<vmem>>, vector<16x32xf32>
    %24 = arith.addf %7, %23 : vector<16x32xf32>
    %c16 = arith.constant 16 : index
    %c0_13 = arith.constant 0 : index
    %25 = vector.load %arg5[%c16, %c0_13] : memref<46x32xf32, #tpu.memory_space<vmem>>, vector<1x32xf32>
    %c17 = arith.constant 17 : index
    %c0_14 = arith.constant 0 : index
    %26 = vector.load %arg5[%c17, %c0_14] : memref<46x32xf32, #tpu.memory_space<vmem>>, vector<1x32xf32>
    %cst_15 = arith.constant dense<0.000000e+00> : vector<16xf32>
    %27 = vector.multi_reduction <add>, %24, %cst_15 [1] : vector<16x32xf32> to vector<16xf32>
    %28 = vector.shape_cast %27 : vector<16xf32> to vector<16x1xf32>
    %cst_16 = arith.constant 3.200000e+01 : f32
    %29 = vector.broadcast %cst_16 : f32 to vector<16x1xf32>
    %30 = arith.divf %28, %29 : vector<16x1xf32>
    %31 = vector.broadcast %30 : vector<16x1xf32> to vector<16x32xf32>
    %32 = arith.subf %24, %31 : vector<16x32xf32>
    %33 = arith.mulf %32, %32 : vector<16x32xf32>
    %cst_17 = arith.constant dense<0.000000e+00> : vector<16xf32>
    %34 = vector.multi_reduction <add>, %33, %cst_17 [1] : vector<16x32xf32> to vector<16xf32>
    %35 = vector.shape_cast %34 : vector<16xf32> to vector<16x1xf32>
    %cst_18 = arith.constant 3.200000e+01 : f32
    %36 = vector.broadcast %cst_18 : f32 to vector<16x1xf32>
    %37 = arith.divf %35, %36 : vector<16x1xf32>
    %38 = vector.broadcast %30 : vector<16x1xf32> to vector<16x32xf32>
    %39 = arith.subf %24, %38 : vector<16x32xf32>
    %cst_19 = arith.constant 9.99999997E-7 : f32
    %40 = vector.broadcast %cst_19 : f32 to vector<16x1xf32>
    %41 = arith.addf %37, %40 : vector<16x1xf32>
    %42 = math.rsqrt %41 : vector<16x1xf32>
    %43 = vector.broadcast %42 : vector<16x1xf32> to vector<16x32xf32>
    %44 = arith.mulf %39, %43 : vector<16x32xf32>
    %45 = vector.broadcast %25 : vector<1x32xf32> to vector<16x32xf32>
    %46 = arith.mulf %44, %45 : vector<16x32xf32>
    %47 = vector.broadcast %26 : vector<1x32xf32> to vector<16x32xf32>
    %48 = arith.addf %46, %47 : vector<16x32xf32>
    %c0_20 = arith.constant 0 : index
    %c0_21 = arith.constant 0 : index
    %c0_22 = arith.constant 0 : index
    %49 = vector.load %arg6[%c0_20, %c0_21, %c0_22] : memref<2x33x256xf32, #tpu.memory_space<vmem>>, vector<1x33x256xf32>
    %50 = vector.shape_cast %49 : vector<1x33x256xf32> to vector<33x256xf32>
    %51 = vector.extract_strided_slice %50 {offsets = [0, 0], sizes = [32, 96], strides = [1, 1]} : vector<33x256xf32> to vector<32x96xf32>
    %52 = vector.extract_strided_slice %50 {offsets = [0, 96], sizes = [32, 32], strides = [1, 1]} : vector<33x256xf32> to vector<32x32xf32>
    %53 = vector.extract_strided_slice %50 {offsets = [0, 128], sizes = [32, 128], strides = [1, 1]} : vector<33x256xf32> to vector<32x128xf32>
    %54 = vector.extract_strided_slice %50 {offsets = [32, 0], sizes = [1, 96], strides = [1, 1]} : vector<33x256xf32> to vector<1x96xf32>
    %55 = vector.extract_strided_slice %50 {offsets = [32, 128], sizes = [1, 128], strides = [1, 1]} : vector<33x256xf32> to vector<1x128xf32>
    %c18 = arith.constant 18 : index
    %c0_23 = arith.constant 0 : index
    %56 = vector.load %arg5[%c18, %c0_23] : memref<46x32xf32, #tpu.memory_space<vmem>>, vector<1x32xf32>
    %c19 = arith.constant 19 : index
    %c0_24 = arith.constant 0 : index
    %57 = vector.load %arg5[%c19, %c0_24] : memref<46x32xf32, #tpu.memory_space<vmem>>, vector<1x32xf32>
    %c20 = arith.constant 20 : index
    %c0_25 = arith.constant 0 : index
    %58 = vector.load %arg5[%c20, %c0_25] : memref<46x32xf32, #tpu.memory_space<vmem>>, vector<1x32xf32>
    %c21 = arith.constant 21 : index
    %c0_26 = arith.constant 0 : index
    %59 = vector.load %arg5[%c21, %c0_26] : memref<46x32xf32, #tpu.memory_space<vmem>>, vector<1x32xf32>
    %c22 = arith.constant 22 : index
    %c0_27 = arith.constant 0 : index
    %60 = vector.load %arg5[%c22, %c0_27] : memref<46x32xf32, #tpu.memory_space<vmem>>, vector<1x32xf32>
    %c23 = arith.constant 23 : index
    %c0_28 = arith.constant 0 : index
    %61 = vector.load %arg5[%c23, %c0_28] : memref<46x32xf32, #tpu.memory_space<vmem>>, vector<1x32xf32>
    %cst_29 = arith.constant dense<0.000000e+00> : vector<16x96xf32>
    %62 = tpu.matmul %48, %51, %cst_29 {dimension_numbers = #tpu.dot_dimension_numbers<[1], [0], [0], [1], [0, 0, 1, 1], [], []>} : vector<16x32xf32>, vector<32x96xf32>, vector<16x96xf32> -> vector<16x96xf32>
    %63 = vector.broadcast %54 : vector<1x96xf32> to vector<16x96xf32>
    %64 = arith.addf %62, %63 : vector<16x96xf32>
    %65 = vector.extract_strided_slice %64 {offsets = [0, 0], sizes = [16, 16], strides = [1, 1]} : vector<16x96xf32> to vector<16x16xf32>
    %cst_30 = arith.constant 2.500000e-01 : f32
    %66 = vector.broadcast %cst_30 : f32 to vector<16x16xf32>
    %67 = arith.mulf %65, %66 : vector<16x16xf32>
    %68 = vector.extract_strided_slice %64 {offsets = [0, 32], sizes = [16, 16], strides = [1, 1]} : vector<16x96xf32> to vector<16x16xf32>
    %69 = vector.extract_strided_slice %64 {offsets = [0, 64], sizes = [16, 16], strides = [1, 1]} : vector<16x96xf32> to vector<16x16xf32>
    %cst_31 = arith.constant dense<0.000000e+00> : vector<16x16xf32>
    %70 = tpu.matmul %67, %68, %cst_31 {dimension_numbers = #tpu.dot_dimension_numbers<[1], [1], [0], [0], [0, 0, 1, 0], [], []>} : vector<16x16xf32>, vector<16x16xf32>, vector<16x16xf32> -> vector<16x16xf32>
    %71 = arith.addf %70, %22 : vector<16x16xf32>
    %cst_32 = arith.constant dense<0xFF800000> : vector<16xf32>
    %72 = vector.multi_reduction <maximumf>, %71, %cst_32 [1] : vector<16x16xf32> to vector<16xf32>
    %73 = vector.shape_cast %72 : vector<16xf32> to vector<16x1xf32>
    %74 = vector.broadcast %73 : vector<16x1xf32> to vector<16x16xf32>
    %75 = arith.subf %71, %74 : vector<16x16xf32>
    %76 = math.exp %75 : vector<16x16xf32>
    %cst_33 = arith.constant dense<0.000000e+00> : vector<16xf32>
    %77 = vector.multi_reduction <add>, %76, %cst_33 [1] : vector<16x16xf32> to vector<16xf32>
    %78 = vector.shape_cast %77 : vector<16xf32> to vector<16x1xf32>
    %79 = tpu.reciprocal %78 {approx = true} : vector<16x1xf32> -> vector<16x1xf32>
    %80 = vector.broadcast %79 : vector<16x1xf32> to vector<16x16xf32>
    %81 = arith.mulf %76, %80 : vector<16x16xf32>
    %cst_34 = arith.constant dense<0.000000e+00> : vector<16x16xf32>
    %82 = tpu.matmul %81, %69, %cst_34 {dimension_numbers = #tpu.dot_dimension_numbers<[1], [0], [0], [1], [0, 0, 1, 1], [], []>} : vector<16x16xf32>, vector<16x16xf32>, vector<16x16xf32> -> vector<16x16xf32>
    %83 = vector.extract_strided_slice %64 {offsets = [0, 16], sizes = [16, 16], strides = [1, 1]} : vector<16x96xf32> to vector<16x16xf32>
    %cst_35 = arith.constant 2.500000e-01 : f32
    %84 = vector.broadcast %cst_35 : f32 to vector<16x16xf32>
    %85 = arith.mulf %83, %84 : vector<16x16xf32>
    %86 = vector.extract_strided_slice %64 {offsets = [0, 48], sizes = [16, 16], strides = [1, 1]} : vector<16x96xf32> to vector<16x16xf32>
    %87 = vector.extract_strided_slice %64 {offsets = [0, 80], sizes = [16, 16], strides = [1, 1]} : vector<16x96xf32> to vector<16x16xf32>
    %cst_36 = arith.constant dense<0.000000e+00> : vector<16x16xf32>
    %88 = tpu.matmul %85, %86, %cst_36 {dimension_numbers = #tpu.dot_dimension_numbers<[1], [1], [0], [0], [0, 0, 1, 0], [], []>} : vector<16x16xf32>, vector<16x16xf32>, vector<16x16xf32> -> vector<16x16xf32>
    %89 = arith.addf %88, %22 : vector<16x16xf32>
    %cst_37 = arith.constant dense<0xFF800000> : vector<16xf32>
    %90 = vector.multi_reduction <maximumf>, %89, %cst_37 [1] : vector<16x16xf32> to vector<16xf32>
    %91 = vector.shape_cast %90 : vector<16xf32> to vector<16x1xf32>
    %92 = vector.broadcast %91 : vector<16x1xf32> to vector<16x16xf32>
    %93 = arith.subf %89, %92 : vector<16x16xf32>
    %94 = math.exp %93 : vector<16x16xf32>
    %cst_38 = arith.constant dense<0.000000e+00> : vector<16xf32>
    %95 = vector.multi_reduction <add>, %94, %cst_38 [1] : vector<16x16xf32> to vector<16xf32>
    %96 = vector.shape_cast %95 : vector<16xf32> to vector<16x1xf32>
    %97 = tpu.reciprocal %96 {approx = true} : vector<16x1xf32> -> vector<16x1xf32>
    %98 = vector.broadcast %97 : vector<16x1xf32> to vector<16x16xf32>
    %99 = arith.mulf %94, %98 : vector<16x16xf32>
    %cst_39 = arith.constant dense<0.000000e+00> : vector<16x16xf32>
    %100 = tpu.matmul %99, %87, %cst_39 {dimension_numbers = #tpu.dot_dimension_numbers<[1], [0], [0], [1], [0, 0, 1, 1], [], []>} : vector<16x16xf32>, vector<16x16xf32>, vector<16x16xf32> -> vector<16x16xf32>
    %101 = tpu.concatenate %82, %100 in 1 : vector<16x16xf32>, vector<16x16xf32> -> vector<16x32xf32>
    %cst_40 = arith.constant dense<0.000000e+00> : vector<16x32xf32>
    %102 = tpu.matmul %101, %52, %cst_40 {dimension_numbers = #tpu.dot_dimension_numbers<[1], [0], [0], [1], [0, 0, 1, 1], [], []>} : vector<16x32xf32>, vector<32x32xf32>, vector<16x32xf32> -> vector<16x32xf32>
    %103 = vector.broadcast %56 : vector<1x32xf32> to vector<16x32xf32>
    %104 = arith.addf %102, %103 : vector<16x32xf32>
    %105 = arith.addf %104, %48 : vector<16x32xf32>
    %cst_41 = arith.constant dense<0.000000e+00> : vector<16xf32>
    %106 = vector.multi_reduction <add>, %105, %cst_41 [1] : vector<16x32xf32> to vector<16xf32>
    %107 = vector.shape_cast %106 : vector<16xf32> to vector<16x1xf32>
    %cst_42 = arith.constant 3.200000e+01 : f32
    %108 = vector.broadcast %cst_42 : f32 to vector<16x1xf32>
    %109 = arith.divf %107, %108 : vector<16x1xf32>
    %110 = vector.broadcast %109 : vector<16x1xf32> to vector<16x32xf32>
    %111 = arith.subf %105, %110 : vector<16x32xf32>
    %112 = arith.mulf %111, %111 : vector<16x32xf32>
    %cst_43 = arith.constant dense<0.000000e+00> : vector<16xf32>
    %113 = vector.multi_reduction <add>, %112, %cst_43 [1] : vector<16x32xf32> to vector<16xf32>
    %114 = vector.shape_cast %113 : vector<16xf32> to vector<16x1xf32>
    %cst_44 = arith.constant 3.200000e+01 : f32
    %115 = vector.broadcast %cst_44 : f32 to vector<16x1xf32>
    %116 = arith.divf %114, %115 : vector<16x1xf32>
    %117 = vector.broadcast %109 : vector<16x1xf32> to vector<16x32xf32>
    %118 = arith.subf %105, %117 : vector<16x32xf32>
    %cst_45 = arith.constant 9.99999997E-7 : f32
    %119 = vector.broadcast %cst_45 : f32 to vector<16x1xf32>
    %120 = arith.addf %116, %119 : vector<16x1xf32>
    %121 = math.rsqrt %120 : vector<16x1xf32>
    %122 = vector.broadcast %121 : vector<16x1xf32> to vector<16x32xf32>
    %123 = arith.mulf %118, %122 : vector<16x32xf32>
    %124 = vector.broadcast %57 : vector<1x32xf32> to vector<16x32xf32>
    %125 = arith.mulf %123, %124 : vector<16x32xf32>
    %126 = vector.broadcast %58 : vector<1x32xf32> to vector<16x32xf32>
    %127 = arith.addf %125, %126 : vector<16x32xf32>
    %cst_46 = arith.constant dense<0.000000e+00> : vector<16x128xf32>
    %128 = tpu.matmul %127, %53, %cst_46 {dimension_numbers = #tpu.dot_dimension_numbers<[1], [0], [0], [1], [0, 0, 1, 1], [], []>} : vector<16x32xf32>, vector<32x128xf32>, vector<16x128xf32> -> vector<16x128xf32>
    %129 = vector.broadcast %55 : vector<1x128xf32> to vector<16x128xf32>
    %130 = arith.addf %128, %129 : vector<16x128xf32>
    %cst_47 = arith.constant 5.000000e-01 : f32
    %131 = vector.broadcast %cst_47 : f32 to vector<16x128xf32>
    %132 = arith.mulf %131, %130 : vector<16x128xf32>
    %cst_48 = arith.constant 4.471500e-02 : f32
    %133 = vector.broadcast %cst_48 : f32 to vector<16x128xf32>
    %134 = arith.mulf %133, %130 : vector<16x128xf32>
    %135 = arith.mulf %134, %130 : vector<16x128xf32>
    %136 = arith.mulf %135, %130 : vector<16x128xf32>
    %137 = arith.addf %130, %136 : vector<16x128xf32>
    %cst_49 = arith.constant 0.797884583 : f32
    %138 = vector.broadcast %cst_49 : f32 to vector<16x128xf32>
    %139 = arith.mulf %138, %137 : vector<16x128xf32>
    %140 = math.tanh %139 : vector<16x128xf32>
    %cst_50 = arith.constant 1.000000e+00 : f32
    %141 = vector.broadcast %cst_50 : f32 to vector<16x128xf32>
    %142 = arith.addf %141, %140 : vector<16x128xf32>
    %143 = arith.mulf %132, %142 : vector<16x128xf32>
    %c0_51 = arith.constant 0 : index
    %c0_52 = arith.constant 0 : index
    %c0_53 = arith.constant 0 : index
    %144 = vector.load %arg7[%c0_51, %c0_52, %c0_53] : memref<2x128x32xf32, #tpu.memory_space<vmem>>, vector<1x128x32xf32>
    %145 = vector.shape_cast %144 : vector<1x128x32xf32> to vector<128x32xf32>
    %cst_54 = arith.constant dense<0.000000e+00> : vector<16x32xf32>
    %146 = tpu.matmul %143, %145, %cst_54 {dimension_numbers = #tpu.dot_dimension_numbers<[1], [0], [0], [1], [0, 0, 1, 1], [], []>} : vector<16x128xf32>, vector<128x32xf32>, vector<16x32xf32> -> vector<16x32xf32>
    %147 = vector.broadcast %61 : vector<1x32xf32> to vector<16x32xf32>
    %148 = arith.addf %146, %147 : vector<16x32xf32>
    %149 = arith.addf %148, %127 : vector<16x32xf32>
    %cst_55 = arith.constant dense<0.000000e+00> : vector<16xf32>
    %150 = vector.multi_reduction <add>, %149, %cst_55 [1] : vector<16x32xf32> to vector<16xf32>
    %151 = vector.shape_cast %150 : vector<16xf32> to vector<16x1xf32>
    %cst_56 = arith.constant 3.200000e+01 : f32
    %152 = vector.broadcast %cst_56 : f32 to vector<16x1xf32>
    %153 = arith.divf %151, %152 : vector<16x1xf32>
    %154 = vector.broadcast %153 : vector<16x1xf32> to vector<16x32xf32>
    %155 = arith.subf %149, %154 : vector<16x32xf32>
    %156 = arith.mulf %155, %155 : vector<16x32xf32>
    %cst_57 = arith.constant dense<0.000000e+00> : vector<16xf32>
    %157 = vector.multi_reduction <add>, %156, %cst_57 [1] : vector<16x32xf32> to vector<16xf32>
    %158 = vector.shape_cast %157 : vector<16xf32> to vector<16x1xf32>
    %cst_58 = arith.constant 3.200000e+01 : f32
    %159 = vector.broadcast %cst_58 : f32 to vector<16x1xf32>
    %160 = arith.divf %158, %159 : vector<16x1xf32>
    %161 = vector.broadcast %153 : vector<16x1xf32> to vector<16x32xf32>
    %162 = arith.subf %149, %161 : vector<16x32xf32>
    %cst_59 = arith.constant 9.99999997E-7 : f32
    %163 = vector.broadcast %cst_59 : f32 to vector<16x1xf32>
    %164 = arith.addf %160, %163 : vector<16x1xf32>
    %165 = math.rsqrt %164 : vector<16x1xf32>
    %166 = vector.broadcast %165 : vector<16x1xf32> to vector<16x32xf32>
    %167 = arith.mulf %162, %166 : vector<16x32xf32>
    %168 = vector.broadcast %59 : vector<1x32xf32> to vector<16x32xf32>
    %169 = arith.mulf %167, %168 : vector<16x32xf32>
    %170 = vector.broadcast %60 : vector<1x32xf32> to vector<16x32xf32>
    %171 = arith.addf %169, %170 : vector<16x32xf32>
    %c1 = arith.constant 1 : index
    %c0_60 = arith.constant 0 : index
    %c0_61 = arith.constant 0 : index
    %172 = vector.load %arg6[%c1, %c0_60, %c0_61] : memref<2x33x256xf32, #tpu.memory_space<vmem>>, vector<1x33x256xf32>
    %173 = vector.shape_cast %172 : vector<1x33x256xf32> to vector<33x256xf32>
    %174 = vector.extract_strided_slice %173 {offsets = [0, 0], sizes = [32, 96], strides = [1, 1]} : vector<33x256xf32> to vector<32x96xf32>
    %175 = vector.extract_strided_slice %173 {offsets = [0, 96], sizes = [32, 32], strides = [1, 1]} : vector<33x256xf32> to vector<32x32xf32>
    %176 = vector.extract_strided_slice %173 {offsets = [0, 128], sizes = [32, 128], strides = [1, 1]} : vector<33x256xf32> to vector<32x128xf32>
    %177 = vector.extract_strided_slice %173 {offsets = [32, 0], sizes = [1, 96], strides = [1, 1]} : vector<33x256xf32> to vector<1x96xf32>
    %178 = vector.extract_strided_slice %173 {offsets = [32, 128], sizes = [1, 128], strides = [1, 1]} : vector<33x256xf32> to vector<1x128xf32>
    %c24 = arith.constant 24 : index
    %c0_62 = arith.constant 0 : index
    %179 = vector.load %arg5[%c24, %c0_62] : memref<46x32xf32, #tpu.memory_space<vmem>>, vector<1x32xf32>
    %c25 = arith.constant 25 : index
    %c0_63 = arith.constant 0 : index
    %180 = vector.load %arg5[%c25, %c0_63] : memref<46x32xf32, #tpu.memory_space<vmem>>, vector<1x32xf32>
    %c26 = arith.constant 26 : index
    %c0_64 = arith.constant 0 : index
    %181 = vector.load %arg5[%c26, %c0_64] : memref<46x32xf32, #tpu.memory_space<vmem>>, vector<1x32xf32>
    %c27 = arith.constant 27 : index
    %c0_65 = arith.constant 0 : index
    %182 = vector.load %arg5[%c27, %c0_65] : memref<46x32xf32, #tpu.memory_space<vmem>>, vector<1x32xf32>
    %c28 = arith.constant 28 : index
    %c0_66 = arith.constant 0 : index
    %183 = vector.load %arg5[%c28, %c0_66] : memref<46x32xf32, #tpu.memory_space<vmem>>, vector<1x32xf32>
    %c29 = arith.constant 29 : index
    %c0_67 = arith.constant 0 : index
    %184 = vector.load %arg5[%c29, %c0_67] : memref<46x32xf32, #tpu.memory_space<vmem>>, vector<1x32xf32>
    %cst_68 = arith.constant dense<0.000000e+00> : vector<16x96xf32>
    %185 = tpu.matmul %171, %174, %cst_68 {dimension_numbers = #tpu.dot_dimension_numbers<[1], [0], [0], [1], [0, 0, 1, 1], [], []>} : vector<16x32xf32>, vector<32x96xf32>, vector<16x96xf32> -> vector<16x96xf32>
    %186 = vector.broadcast %177 : vector<1x96xf32> to vector<16x96xf32>
    %187 = arith.addf %185, %186 : vector<16x96xf32>
    %188 = vector.extract_strided_slice %187 {offsets = [0, 0], sizes = [16, 16], strides = [1, 1]} : vector<16x96xf32> to vector<16x16xf32>
    %cst_69 = arith.constant 2.500000e-01 : f32
    %189 = vector.broadcast %cst_69 : f32 to vector<16x16xf32>
    %190 = arith.mulf %188, %189 : vector<16x16xf32>
    %191 = vector.extract_strided_slice %187 {offsets = [0, 32], sizes = [16, 16], strides = [1, 1]} : vector<16x96xf32> to vector<16x16xf32>
    %192 = vector.extract_strided_slice %187 {offsets = [0, 64], sizes = [16, 16], strides = [1, 1]} : vector<16x96xf32> to vector<16x16xf32>
    %cst_70 = arith.constant dense<0.000000e+00> : vector<16x16xf32>
    %193 = tpu.matmul %190, %191, %cst_70 {dimension_numbers = #tpu.dot_dimension_numbers<[1], [1], [0], [0], [0, 0, 1, 0], [], []>} : vector<16x16xf32>, vector<16x16xf32>, vector<16x16xf32> -> vector<16x16xf32>
    %194 = arith.addf %193, %22 : vector<16x16xf32>
    %cst_71 = arith.constant dense<0xFF800000> : vector<16xf32>
    %195 = vector.multi_reduction <maximumf>, %194, %cst_71 [1] : vector<16x16xf32> to vector<16xf32>
    %196 = vector.shape_cast %195 : vector<16xf32> to vector<16x1xf32>
    %197 = vector.broadcast %196 : vector<16x1xf32> to vector<16x16xf32>
    %198 = arith.subf %194, %197 : vector<16x16xf32>
    %199 = math.exp %198 : vector<16x16xf32>
    %cst_72 = arith.constant dense<0.000000e+00> : vector<16xf32>
    %200 = vector.multi_reduction <add>, %199, %cst_72 [1] : vector<16x16xf32> to vector<16xf32>
    %201 = vector.shape_cast %200 : vector<16xf32> to vector<16x1xf32>
    %202 = tpu.reciprocal %201 {approx = true} : vector<16x1xf32> -> vector<16x1xf32>
    %203 = vector.broadcast %202 : vector<16x1xf32> to vector<16x16xf32>
    %204 = arith.mulf %199, %203 : vector<16x16xf32>
    %cst_73 = arith.constant dense<0.000000e+00> : vector<16x16xf32>
    %205 = tpu.matmul %204, %192, %cst_73 {dimension_numbers = #tpu.dot_dimension_numbers<[1], [0], [0], [1], [0, 0, 1, 1], [], []>} : vector<16x16xf32>, vector<16x16xf32>, vector<16x16xf32> -> vector<16x16xf32>
    %206 = vector.extract_strided_slice %187 {offsets = [0, 16], sizes = [16, 16], strides = [1, 1]} : vector<16x96xf32> to vector<16x16xf32>
    %cst_74 = arith.constant 2.500000e-01 : f32
    %207 = vector.broadcast %cst_74 : f32 to vector<16x16xf32>
    %208 = arith.mulf %206, %207 : vector<16x16xf32>
    %209 = vector.extract_strided_slice %187 {offsets = [0, 48], sizes = [16, 16], strides = [1, 1]} : vector<16x96xf32> to vector<16x16xf32>
    %210 = vector.extract_strided_slice %187 {offsets = [0, 80], sizes = [16, 16], strides = [1, 1]} : vector<16x96xf32> to vector<16x16xf32>
    %cst_75 = arith.constant dense<0.000000e+00> : vector<16x16xf32>
    %211 = tpu.matmul %208, %209, %cst_75 {dimension_numbers = #tpu.dot_dimension_numbers<[1], [1], [0], [0], [0, 0, 1, 0], [], []>} : vector<16x16xf32>, vector<16x16xf32>, vector<16x16xf32> -> vector<16x16xf32>
    %212 = arith.addf %211, %22 : vector<16x16xf32>
    %cst_76 = arith.constant dense<0xFF800000> : vector<16xf32>
    %213 = vector.multi_reduction <maximumf>, %212, %cst_76 [1] : vector<16x16xf32> to vector<16xf32>
    %214 = vector.shape_cast %213 : vector<16xf32> to vector<16x1xf32>
    %215 = vector.broadcast %214 : vector<16x1xf32> to vector<16x16xf32>
    %216 = arith.subf %212, %215 : vector<16x16xf32>
    %217 = math.exp %216 : vector<16x16xf32>
    %cst_77 = arith.constant dense<0.000000e+00> : vector<16xf32>
    %218 = vector.multi_reduction <add>, %217, %cst_77 [1] : vector<16x16xf32> to vector<16xf32>
    %219 = vector.shape_cast %218 : vector<16xf32> to vector<16x1xf32>
    %220 = tpu.reciprocal %219 {approx = true} : vector<16x1xf32> -> vector<16x1xf32>
    %221 = vector.broadcast %220 : vector<16x1xf32> to vector<16x16xf32>
    %222 = arith.mulf %217, %221 : vector<16x16xf32>
    %cst_78 = arith.constant dense<0.000000e+00> : vector<16x16xf32>
    %223 = tpu.matmul %222, %210, %cst_78 {dimension_numbers = #tpu.dot_dimension_numbers<[1], [0], [0], [1], [0, 0, 1, 1], [], []>} : vector<16x16xf32>, vector<16x16xf32>, vector<16x16xf32> -> vector<16x16xf32>
    %224 = tpu.concatenate %205, %223 in 1 : vector<16x16xf32>, vector<16x16xf32> -> vector<16x32xf32>
    %cst_79 = arith.constant dense<0.000000e+00> : vector<16x32xf32>
    %225 = tpu.matmul %224, %175, %cst_79 {dimension_numbers = #tpu.dot_dimension_numbers<[1], [0], [0], [1], [0, 0, 1, 1], [], []>} : vector<16x32xf32>, vector<32x32xf32>, vector<16x32xf32> -> vector<16x32xf32>
    %226 = vector.broadcast %179 : vector<1x32xf32> to vector<16x32xf32>
    %227 = arith.addf %225, %226 : vector<16x32xf32>
    %228 = arith.addf %227, %171 : vector<16x32xf32>
    %cst_80 = arith.constant dense<0.000000e+00> : vector<16xf32>
    %229 = vector.multi_reduction <add>, %228, %cst_80 [1] : vector<16x32xf32> to vector<16xf32>
    %230 = vector.shape_cast %229 : vector<16xf32> to vector<16x1xf32>
    %cst_81 = arith.constant 3.200000e+01 : f32
    %231 = vector.broadcast %cst_81 : f32 to vector<16x1xf32>
    %232 = arith.divf %230, %231 : vector<16x1xf32>
    %233 = vector.broadcast %232 : vector<16x1xf32> to vector<16x32xf32>
    %234 = arith.subf %228, %233 : vector<16x32xf32>
    %235 = arith.mulf %234, %234 : vector<16x32xf32>
    %cst_82 = arith.constant dense<0.000000e+00> : vector<16xf32>
    %236 = vector.multi_reduction <add>, %235, %cst_82 [1] : vector<16x32xf32> to vector<16xf32>
    %237 = vector.shape_cast %236 : vector<16xf32> to vector<16x1xf32>
    %cst_83 = arith.constant 3.200000e+01 : f32
    %238 = vector.broadcast %cst_83 : f32 to vector<16x1xf32>
    %239 = arith.divf %237, %238 : vector<16x1xf32>
    %240 = vector.broadcast %232 : vector<16x1xf32> to vector<16x32xf32>
    %241 = arith.subf %228, %240 : vector<16x32xf32>
    %cst_84 = arith.constant 9.99999997E-7 : f32
    %242 = vector.broadcast %cst_84 : f32 to vector<16x1xf32>
    %243 = arith.addf %239, %242 : vector<16x1xf32>
    %244 = math.rsqrt %243 : vector<16x1xf32>
    %245 = vector.broadcast %244 : vector<16x1xf32> to vector<16x32xf32>
    %246 = arith.mulf %241, %245 : vector<16x32xf32>
    %247 = vector.broadcast %180 : vector<1x32xf32> to vector<16x32xf32>
    %248 = arith.mulf %246, %247 : vector<16x32xf32>
    %249 = vector.broadcast %181 : vector<1x32xf32> to vector<16x32xf32>
    %250 = arith.addf %248, %249 : vector<16x32xf32>
    %cst_85 = arith.constant dense<0.000000e+00> : vector<16x128xf32>
    %251 = tpu.matmul %250, %176, %cst_85 {dimension_numbers = #tpu.dot_dimension_numbers<[1], [0], [0], [1], [0, 0, 1, 1], [], []>} : vector<16x32xf32>, vector<32x128xf32>, vector<16x128xf32> -> vector<16x128xf32>
    %252 = vector.broadcast %178 : vector<1x128xf32> to vector<16x128xf32>
    %253 = arith.addf %251, %252 : vector<16x128xf32>
    %cst_86 = arith.constant 5.000000e-01 : f32
    %254 = vector.broadcast %cst_86 : f32 to vector<16x128xf32>
    %255 = arith.mulf %254, %253 : vector<16x128xf32>
    %cst_87 = arith.constant 4.471500e-02 : f32
    %256 = vector.broadcast %cst_87 : f32 to vector<16x128xf32>
    %257 = arith.mulf %256, %253 : vector<16x128xf32>
    %258 = arith.mulf %257, %253 : vector<16x128xf32>
    %259 = arith.mulf %258, %253 : vector<16x128xf32>
    %260 = arith.addf %253, %259 : vector<16x128xf32>
    %cst_88 = arith.constant 0.797884583 : f32
    %261 = vector.broadcast %cst_88 : f32 to vector<16x128xf32>
    %262 = arith.mulf %261, %260 : vector<16x128xf32>
    %263 = math.tanh %262 : vector<16x128xf32>
    %cst_89 = arith.constant 1.000000e+00 : f32
    %264 = vector.broadcast %cst_89 : f32 to vector<16x128xf32>
    %265 = arith.addf %264, %263 : vector<16x128xf32>
    %266 = arith.mulf %255, %265 : vector<16x128xf32>
    %c1_90 = arith.constant 1 : index
    %c0_91 = arith.constant 0 : index
    %c0_92 = arith.constant 0 : index
    %267 = vector.load %arg7[%c1_90, %c0_91, %c0_92] : memref<2x128x32xf32, #tpu.memory_space<vmem>>, vector<1x128x32xf32>
    %268 = vector.shape_cast %267 : vector<1x128x32xf32> to vector<128x32xf32>
    %cst_93 = arith.constant dense<0.000000e+00> : vector<16x32xf32>
    %269 = tpu.matmul %266, %268, %cst_93 {dimension_numbers = #tpu.dot_dimension_numbers<[1], [0], [0], [1], [0, 0, 1, 1], [], []>} : vector<16x128xf32>, vector<128x32xf32>, vector<16x32xf32> -> vector<16x32xf32>
    %270 = vector.broadcast %184 : vector<1x32xf32> to vector<16x32xf32>
    %271 = arith.addf %269, %270 : vector<16x32xf32>
    %272 = arith.addf %271, %250 : vector<16x32xf32>
    %cst_94 = arith.constant dense<0.000000e+00> : vector<16xf32>
    %273 = vector.multi_reduction <add>, %272, %cst_94 [1] : vector<16x32xf32> to vector<16xf32>
    %274 = vector.shape_cast %273 : vector<16xf32> to vector<16x1xf32>
    %cst_95 = arith.constant 3.200000e+01 : f32
    %275 = vector.broadcast %cst_95 : f32 to vector<16x1xf32>
    %276 = arith.divf %274, %275 : vector<16x1xf32>
    %277 = vector.broadcast %276 : vector<16x1xf32> to vector<16x32xf32>
    %278 = arith.subf %272, %277 : vector<16x32xf32>
    %279 = arith.mulf %278, %278 : vector<16x32xf32>
    %cst_96 = arith.constant dense<0.000000e+00> : vector<16xf32>
    %280 = vector.multi_reduction <add>, %279, %cst_96 [1] : vector<16x32xf32> to vector<16xf32>
    %281 = vector.shape_cast %280 : vector<16xf32> to vector<16x1xf32>
    %cst_97 = arith.constant 3.200000e+01 : f32
    %282 = vector.broadcast %cst_97 : f32 to vector<16x1xf32>
    %283 = arith.divf %281, %282 : vector<16x1xf32>
    %284 = vector.broadcast %276 : vector<16x1xf32> to vector<16x32xf32>
    %285 = arith.subf %272, %284 : vector<16x32xf32>
    %cst_98 = arith.constant 9.99999997E-7 : f32
    %286 = vector.broadcast %cst_98 : f32 to vector<16x1xf32>
    %287 = arith.addf %283, %286 : vector<16x1xf32>
    %288 = math.rsqrt %287 : vector<16x1xf32>
    %289 = vector.broadcast %288 : vector<16x1xf32> to vector<16x32xf32>
    %290 = arith.mulf %285, %289 : vector<16x32xf32>
    %291 = vector.broadcast %182 : vector<1x32xf32> to vector<16x32xf32>
    %292 = arith.mulf %290, %291 : vector<16x32xf32>
    %293 = vector.broadcast %183 : vector<1x32xf32> to vector<16x32xf32>
    %294 = arith.addf %292, %293 : vector<16x32xf32>
    %295 = vector.extract_strided_slice %294 {offsets = [0, 0], sizes = [7, 32], strides = [1, 1]} : vector<16x32xf32> to vector<7x32xf32>
    %c0_99 = arith.constant 0 : index
    %c0_100 = arith.constant 0 : index
    %c0_101 = arith.constant 0 : index
    %296 = vector.load %arg8[%c0_99, %c0_100, %c0_101] : memref<2x7x32xf32, #tpu.memory_space<vmem>>, vector<1x7x32xf32>
    %297 = vector.shape_cast %296 : vector<1x7x32xf32> to vector<7x32xf32>
    %298 = vector.shape_cast %295 : vector<7x32xf32> to vector<1x7x32xf32>
    tpu.vector_store %arg8[%c0_99, %c0_100, %c0_101], %298 {strides = array<i32>} : memref<2x7x32xf32, #tpu.memory_space<vmem>>, vector<1x7x32xf32>,
    %299 = vector.extract_strided_slice %7 {offsets = [1, 0], sizes = [7, 32], strides = [1, 1]} : vector<16x32xf32> to vector<7x32xf32>
    %c0_102 = arith.constant 0 : index
    %c0_103 = arith.constant 0 : index
    %c0_104 = arith.constant 0 : index
    %300 = vector.load %arg9[%c0_102, %c0_103, %c0_104] : memref<2x7x32xf32, #tpu.memory_space<vmem>>, vector<1x7x32xf32>
    %301 = vector.shape_cast %300 : vector<1x7x32xf32> to vector<7x32xf32>
    %302 = vector.shape_cast %299 : vector<7x32xf32> to vector<1x7x32xf32>
    tpu.vector_store %arg9[%c0_102, %c0_103, %c0_104], %302 {strides = array<i32>} : memref<2x7x32xf32, #tpu.memory_space<vmem>>, vector<1x7x32xf32>,
    %303 = vector.extract_strided_slice %13 {offsets = [0, 0], sizes = [7, 32], strides = [1, 1]} : vector<16x32xf32> to vector<7x32xf32>
    %c0_105 = arith.constant 0 : index
    %c0_106 = arith.constant 0 : index
    %c0_107 = arith.constant 0 : index
    %304 = vector.load %arg10[%c0_105, %c0_106, %c0_107] : memref<2x7x32xf32, #tpu.memory_space<vmem>>, vector<1x7x32xf32>
    %305 = vector.shape_cast %304 : vector<1x7x32xf32> to vector<7x32xf32>
    %306 = vector.shape_cast %303 : vector<7x32xf32> to vector<1x7x32xf32>
    tpu.vector_store %arg10[%c0_105, %c0_106, %c0_107], %306 {strides = array<i32>} : memref<2x7x32xf32, #tpu.memory_space<vmem>>, vector<1x7x32xf32>,
    %307 = vector.extract_strided_slice %7 {offsets = [0, 0], sizes = [8, 32], strides = [1, 1]} : vector<16x32xf32> to vector<8x32xf32>
    %c0_108 = arith.constant 0 : index
    %c0_109 = arith.constant 0 : index
    %c0_110 = arith.constant 0 : index
    %308 = vector.load %arg11[%c0_108, %c0_109, %c0_110] : memref<2x8x64xf32, #tpu.memory_space<vmem>>, vector<1x8x32xf32>
    %309 = vector.shape_cast %308 : vector<1x8x32xf32> to vector<8x32xf32>
    %310 = vector.shape_cast %307 : vector<8x32xf32> to vector<1x8x32xf32>
    tpu.vector_store %arg11[%c0_108, %c0_109, %c0_110], %310 {strides = array<i32>} : memref<2x8x64xf32, #tpu.memory_space<vmem>>, vector<1x8x32xf32>,
    %311 = vector.extract_strided_slice %294 {offsets = [0, 0], sizes = [8, 32], strides = [1, 1]} : vector<16x32xf32> to vector<8x32xf32>
    %c0_111 = arith.constant 0 : index
    %c0_112 = arith.constant 0 : index
    %c32 = arith.constant 32 : index
    %312 = vector.load %arg11[%c0_111, %c0_112, %c32] : memref<2x8x64xf32, #tpu.memory_space<vmem>>, vector<1x8x32xf32>
    %313 = vector.shape_cast %312 : vector<1x8x32xf32> to vector<8x32xf32>
    %314 = vector.shape_cast %311 : vector<8x32xf32> to vector<1x8x32xf32>
    tpu.vector_store %arg11[%c0_111, %c0_112, %c32], %314 {strides = array<i32>} : memref<2x8x64xf32, #tpu.memory_space<vmem>>, vector<1x8x32xf32>,
    %315 = vector.extract_strided_slice %294 {offsets = [8, 0], sizes = [7, 32], strides = [1, 1]} : vector<16x32xf32> to vector<7x32xf32>
    %c1_113 = arith.constant 1 : index
    %c0_114 = arith.constant 0 : index
    %c0_115 = arith.constant 0 : index
    %316 = vector.load %arg8[%c1_113, %c0_114, %c0_115] : memref<2x7x32xf32, #tpu.memory_space<vmem>>, vector<1x7x32xf32>
    %317 = vector.shape_cast %316 : vector<1x7x32xf32> to vector<7x32xf32>
    %318 = vector.shape_cast %315 : vector<7x32xf32> to vector<1x7x32xf32>
    tpu.vector_store %arg8[%c1_113, %c0_114, %c0_115], %318 {strides = array<i32>} : memref<2x7x32xf32, #tpu.memory_space<vmem>>, vector<1x7x32xf32>,
    %319 = vector.extract_strided_slice %7 {offsets = [9, 0], sizes = [7, 32], strides = [1, 1]} : vector<16x32xf32> to vector<7x32xf32>
    %c1_116 = arith.constant 1 : index
    %c0_117 = arith.constant 0 : index
    %c0_118 = arith.constant 0 : index
    %320 = vector.load %arg9[%c1_116, %c0_117, %c0_118] : memref<2x7x32xf32, #tpu.memory_space<vmem>>, vector<1x7x32xf32>
    %321 = vector.shape_cast %320 : vector<1x7x32xf32> to vector<7x32xf32>
    %322 = vector.shape_cast %319 : vector<7x32xf32> to vector<1x7x32xf32>
    tpu.vector_store %arg9[%c1_116, %c0_117, %c0_118], %322 {strides = array<i32>} : memref<2x7x32xf32, #tpu.memory_space<vmem>>, vector<1x7x32xf32>,
    %323 = vector.extract_strided_slice %13 {offsets = [8, 0], sizes = [7, 32], strides = [1, 1]} : vector<16x32xf32> to vector<7x32xf32>
    %c1_119 = arith.constant 1 : index
    %c0_120 = arith.constant 0 : index
    %c0_121 = arith.constant 0 : index
    %324 = vector.load %arg10[%c1_119, %c0_120, %c0_121] : memref<2x7x32xf32, #tpu.memory_space<vmem>>, vector<1x7x32xf32>
    %325 = vector.shape_cast %324 : vector<1x7x32xf32> to vector<7x32xf32>
    %326 = vector.shape_cast %323 : vector<7x32xf32> to vector<1x7x32xf32>
    tpu.vector_store %arg10[%c1_119, %c0_120, %c0_121], %326 {strides = array<i32>} : memref<2x7x32xf32, #tpu.memory_space<vmem>>, vector<1x7x32xf32>,
    %327 = vector.extract_strided_slice %7 {offsets = [8, 0], sizes = [8, 32], strides = [1, 1]} : vector<16x32xf32> to vector<8x32xf32>
    %c1_122 = arith.constant 1 : index
    %c0_123 = arith.constant 0 : index
    %c0_124 = arith.constant 0 : index
    %328 = vector.load %arg11[%c1_122, %c0_123, %c0_124] : memref<2x8x64xf32, #tpu.memory_space<vmem>>, vector<1x8x32xf32>
    %329 = vector.shape_cast %328 : vector<1x8x32xf32> to vector<8x32xf32>
    %330 = vector.shape_cast %327 : vector<8x32xf32> to vector<1x8x32xf32>
    tpu.vector_store %arg11[%c1_122, %c0_123, %c0_124], %330 {strides = array<i32>} : memref<2x8x64xf32, #tpu.memory_space<vmem>>, vector<1x8x32xf32>,
    %331 = vector.extract_strided_slice %294 {offsets = [8, 0], sizes = [8, 32], strides = [1, 1]} : vector<16x32xf32> to vector<8x32xf32>
    %c1_125 = arith.constant 1 : index
    %c0_126 = arith.constant 0 : index
    %c32_127 = arith.constant 32 : index
    %332 = vector.load %arg11[%c1_125, %c0_126, %c32_127] : memref<2x8x64xf32, #tpu.memory_space<vmem>>, vector<1x8x32xf32>
    %333 = vector.shape_cast %332 : vector<1x8x32xf32> to vector<8x32xf32>
    %334 = vector.shape_cast %331 : vector<8x32xf32> to vector<1x8x32xf32>
    tpu.vector_store %arg11[%c1_125, %c0_126, %c32_127], %334 {strides = array<i32>} : memref<2x8x64xf32, #tpu.memory_space<vmem>>, vector<1x8x32xf32>,
    return
  }
  func.func @transform_0(%arg0: i32) -> (i32, i32) {
    %c0_i32 = arith.constant 0 : i32
    %c0_i32_0 = arith.constant 0 : i32
    %c0_i32_1 = arith.constant 0 : i32
    return %c0_i32, %c0_i32_0 : i32, i32
  }
  func.func @transform_1(%arg0: i32) -> (i32, i32) {
    %c0_i32 = arith.constant 0 : i32
    %c0_i32_0 = arith.constant 0 : i32
    %c0_i32_1 = arith.constant 0 : i32
    return %c0_i32, %c0_i32_0 : i32, i32
  }
  func.func @transform_2(%arg0: i32) -> (i32, i32) {
    %c0_i32 = arith.constant 0 : i32
    %c0_i32_0 = arith.constant 0 : i32
    %c0_i32_1 = arith.constant 0 : i32
    return %c0_i32, %c0_i32_0 : i32, i32
  }
  func.func @transform_3(%arg0: i32) -> (i32, i32) {
    %c0_i32 = arith.constant 0 : i32
    %c0_i32_0 = arith.constant 0 : i32
    %c0_i32_1 = arith.constant 0 : i32
    return %c0_i32, %c0_i32_0 : i32, i32
  }
  func.func @transform_4(%arg0: i32) -> (i32, i32) {
    %c0_i32 = arith.constant 0 : i32
    %c0_i32_0 = arith.constant 0 : i32
    %c0_i32_1 = arith.constant 0 : i32
    return %c0_i32, %c0_i32_0 : i32, i32
  }
  func.func @transform_5(%arg0: i32) -> (i32, i32, i32) {
    %c0_i32 = arith.constant 0 : i32
    %c0_i32_0 = arith.constant 0 : i32
    %c0_i32_1 = arith.constant 0 : i32
    %c0_i32_2 = arith.constant 0 : i32
    return %c0_i32, %c0_i32_0, %c0_i32_1 : i32, i32, i32
  }
  func.func @transform_6(%arg0: i32) -> (i32, i32, i32) {
    %c0_i32 = arith.constant 0 : i32
    %c0_i32_0 = arith.constant 0 : i32
    %c0_i32_1 = arith.constant 0 : i32
    %c0_i32_2 = arith.constant 0 : i32
    return %c0_i32, %c0_i32_0, %c0_i32_1 : i32, i32, i32
  }
  func.func @transform_7(%arg0: i32) -> (i32, i32, i32) {
    %c0_i32 = arith.constant 0 : i32
    %c0_i32_0 = arith.constant 0 : i32
    %c0_i32_1 = arith.constant 0 : i32
    %c0_i32_2 = arith.constant 0 : i32
    return %c0_i32, %c0_i32_0, %c0_i32_1 : i32, i32, i32
  }
  func.func @transform_8(%arg0: i32) -> (i32, i32, i32) {
    %c0_i32 = arith.constant 0 : i32
    %c0_i32_0 = arith.constant 0 : i32
    %c0_i32_1 = arith.constant 0 : i32
    %c0_i32_2 = arith.constant 0 : i32
    return %c0_i32, %c0_i32_0, %c0_i32_1 : i32, i32, i32
  }
  func.func @transform_9(%arg0: i32) -> (i32, i32, i32) {
    %c0_i32 = arith.constant 0 : i32
    %c0_i32_0 = arith.constant 0 : i32
    %c0_i32_1 = arith.constant 0 : i32
    %c0_i32_2 = arith.constant 0 : i32
    return %c0_i32, %c0_i32_0, %c0_i32_1 : i32, i32, i32
  }
  func.func @transform_10(%arg0: i32) -> (i32, i32, i32) {
    %c0_i32 = arith.constant 0 : i32
    %c0_i32_0 = arith.constant 0 : i32
    %c0_i32_1 = arith.constant 0 : i32
    %c0_i32_2 = arith.constant 0 : i32
    return %c0_i32, %c0_i32_0, %c0_i32_1 : i32, i32, i32
  }
}

</mosaic_0001>

<llo_original>
// kernel: basic_cl4rec_forward.1
$region0: #{basic_cl4rec_forward.1}
  #allocation0 [shape = 'u32[]', space=smem, size = 0x4, offset = 0x4, fixed_abs, tag = 'smem constant byte address 0x4 - core index']
  #allocation1 [shape = 'u32[72,128]{1,0:T(1,128)}', space=vmem, size = 0x9000, scoped, tag = 'internal scratch']
  %s0 = inlined_call_operand.vmem [shape: s32[16,1], index: 0, kind: input, shape index: {}]
  %s1 = inlined_call_operand.vmem [shape: s32[16,1], index: 1, kind: input, shape index: {}]
  %s2 = inlined_call_operand.vmem [shape: f32[1,16], index: 2, kind: input, shape index: {}]
  %s3 = inlined_call_operand.vmem [shape: f32[51,32], index: 3, kind: input, shape index: {}]
  %s4 = inlined_call_operand.vmem [shape: f32[46,32], index: 4, kind: input, shape index: {}]
  %s5 = inlined_call_operand.vmem [shape: f32[2,33,256], index: 5, kind: input, shape index: {}]
  %s6 = inlined_call_operand.vmem [shape: f32[2,128,32], index: 6, kind: input, shape index: {}]
  %s7 = inlined_call_operand.vmem [shape: f32[2,7,32], index: 7, kind: output, shape index: {0}]
  %s8 = inlined_call_operand.vmem [shape: f32[2,7,32], index: 8, kind: output, shape index: {1}]
  %s9 = inlined_call_operand.vmem [shape: f32[2,7,32], index: 9, kind: output, shape index: {2}]
  %s10 = inlined_call_operand.hbm [shape: f32[2,8,64], index: 10, kind: output, shape index: {3}]
  %11 = xla_tuple %s7, %s8, %s9, %s10
  %s12 = sld [smem:[#allocation0]]
  $region62: #{basic_cl4rec_forward.1} parent=0
    _
  %s14 = ssub.s32 1, %s12
  %s15 = scalar_select 0, %s14, %s12
  $region1: #{basic_cl4rec_forward.1} parent=0
    #allocation2 [shape = 'u8[8192]{0}', space=vmem, size = 0x2000, scoped, tag = 'output window, operand 3, single buffered']
    #allocation3 [shape = 's32[1]{0}', space=sflag, size = 0x4, scoped, tag = 'scoped memory for basic_cl4rec_forward.1']
    %16 = vsyncpa [#allocation3], 0
    // Predicated region
    $region2: #{basic_cl4rec_forward.1} parent=1 // pred_check
      _
    $region3: #{basic_cl4rec_forward.1} parent=1 // pred_check_branch
      %18 = sbr.rel (0) target = $region5
    $region4: #{basic_cl4rec_forward.1} parent=1 // pred_region
      _
    $region5: #{basic_cl4rec_forward.1} parent=1 // pred_fallthru
      _
    // Predicated region
    $region6: #{basic_cl4rec_forward.1} parent=1 // pred_check
      _
    $region7: #{basic_cl4rec_forward.1} parent=1 // pred_check_branch
      %20 = sbr.rel (0) target = $region9
    $region8: #{basic_cl4rec_forward.1} parent=1 // pred_region
      _
    $region9: #{basic_cl4rec_forward.1} parent=1 // pred_fallthru
      _
    // Predicated region
    $region10: #{basic_cl4rec_forward.1} parent=1 // pred_check
      _
    $region11: #{basic_cl4rec_forward.1} parent=1 // pred_check_branch
      %22 = sbr.rel (0) target = $region13
    $region12: #{basic_cl4rec_forward.1} parent=1 // pred_region
      _
    $region13: #{basic_cl4rec_forward.1} parent=1 // pred_fallthru
      _
    // Predicated region
    $region14: #{basic_cl4rec_forward.1} parent=1 // pred_check
      _
    $region15: #{basic_cl4rec_forward.1} parent=1 // pred_check_branch
      %24 = sbr.rel (0) target = $region17
    $region16: #{basic_cl4rec_forward.1} parent=1 // pred_region
      _
    $region17: #{basic_cl4rec_forward.1} parent=1 // pred_fallthru
      _
    // Predicated region
    $region18: #{basic_cl4rec_forward.1} parent=1 // pred_check
      _
    $region19: #{basic_cl4rec_forward.1} parent=1 // pred_check_branch
      %26 = sbr.rel (0) target = $region21
    $region20: #{basic_cl4rec_forward.1} parent=1 // pred_region
      _
    $region21: #{basic_cl4rec_forward.1} parent=1 // pred_fallthru
      _
    // Predicated region
    $region22: #{basic_cl4rec_forward.1} parent=1 // pred_check
      _
    $region23: #{basic_cl4rec_forward.1} parent=1 // pred_check_branch
      %28 = sbr.rel (0) target = $region25
    $region24: #{basic_cl4rec_forward.1} parent=1 // pred_region
      _
    $region25: #{basic_cl4rec_forward.1} parent=1 // pred_fallthru
      _
    // Predicated region
    $region26: #{basic_cl4rec_forward.1} parent=1 // pred_check
      _
    $region27: #{basic_cl4rec_forward.1} parent=1 // pred_check_branch
      %30 = sbr.rel (0) target = $region29
    $region28: #{basic_cl4rec_forward.1} parent=1 // pred_region
      _
    $region29: #{basic_cl4rec_forward.1} parent=1 // pred_fallthru
      _
    %v31 = vlaneseq
    %v32 = vand.u32 %v31, 127
    %v33 = vld [vmem:[%s3] sm:$0xff]
    %v34 = vld [vmem:[%s3 + $0x8] sm:$0xff]
    %v35 = vld [vmem:[%s3 + $0x10] sm:$0xff]
    %v36 = vld [vmem:[%s3 + $0x18] sm:$0xff]
    %v37 = vld [vmem:[%s3 + $0x20] sm:$0xff]
    %v38 = vld [vmem:[%s3 + $0x28] sm:$0xff]
    %v39 = vld [vmem:[%s3 + $0x30] sm:$0x7]
    %v40 = vld [vmem:[%s0] sm:$0xff]
    %v41 = vld [vmem:[%s0 + $0x8] sm:$0xff]
    %42 = vset.pattern.permute.xlu0 0
    %43 = vperm.xlu0 %42, %v40
    %v44 = vpop.permute.xlu0 %43
    %45 = vset.pattern.permute.xlu0 0
    %46 = vperm.xlu0 %45, %v41
    %v47 = vpop.permute.xlu0 %46
    %vm48 = vcmp.eq.s32.totalorder %v44, %v32
    %vm49 = vcmp.eq.s32.totalorder %v47, %v32
    %v50 = vsel %vm48, 1, 0
    %v51 = vsel %vm49, 1, 0
    %v52 = vcvt.s32.f32 %v50
    %v53 = vcvt.s32.f32 %v51
    %vm54 = vcmask 416768
    %v56 = vsel %vm54, %v52, 0
    %v59 = vsel %vm54, %v53, 0
    %vm61 = vcmask 1042432
    %v63 = vsel %vm61, %v39, 0
    %65 = vmatpush.msra.mxu0 0.0
    %66 = vmatpush.msra.mxu0 0.0
    %67 = vmatpush.msra.mxu0 0.0
    %68 = vmatpush.msra.mxu0 0.0
    %69 = vmatpush.msra.mxu0 0.0
    %70 = vmatpush.msra.mxu0 0.0
    %71 = vmatpush.msra.mxu0 0.0
    %72 = vmatpush.msra.mxu0 0.0
    %73 = vmatpush.msra.mxu0 0.0
    %74 = vmatpush.msra.mxu0 %v63
    %75 = vmatpush.msra.mxu0 %v38
    %76 = vmatpush.msra.mxu0 %v37
    %77 = vmatpush.msra.mxu0 %v36
    %78 = vmatpush.msra.mxu0 %v35
    %79 = vmatpush.msra.mxu0 %v34
    %80 = vmatpush.msra.mxu0 %v33
    %81 = vmatmul.f32.gmra.mxu0 %v56
    %v82 = vpop.f32.mrf.mxu0
    %v83 = vadd.f32 0.0, %v82
    %84 = vmatmul.f32.gmra.mxu0 %v59
    %v85 = vpop.f32.mrf.mxu0
    %v86 = vadd.f32 0.0, %v85
    %87 = vdwg.mxu0
    %v88 = vld [vmem:[%s1] sm:$0xff]
    %v89 = vld [vmem:[%s1 + $0x8] sm:$0xff]
    %90 = vset.pattern.permute.xlu0 0
    %91 = vperm.xlu0 %90, %v88
    %v92 = vpop.permute.xlu0 %91
    %93 = vset.pattern.permute.xlu0 0
    %94 = vperm.xlu0 %93, %v89
    %v95 = vpop.permute.xlu0 %94
    %vm96 = vcmp.eq.s32.totalorder %v92, %v32
    %vm97 = vcmp.eq.s32.totalorder %v95, %v32
    %v98 = vsel %vm96, 1, 0
    %v99 = vsel %vm97, 1, 0
    %v100 = vcvt.s32.f32 %v98
    %v101 = vcvt.s32.f32 %v99
    %v103 = vsel %vm54, %v100, 0
    %v106 = vsel %vm54, %v101, 0
    %108 = vmatpush.msra.mxu0 0.0
    %109 = vmatpush.msra.mxu0 0.0
    %110 = vmatpush.msra.mxu0 0.0
    %111 = vmatpush.msra.mxu0 0.0
    %112 = vmatpush.msra.mxu0 0.0
    %113 = vmatpush.msra.mxu0 0.0
    %114 = vmatpush.msra.mxu0 0.0
    %115 = vmatpush.msra.mxu0 0.0
    %116 = vmatpush.msra.mxu0 0.0
    %117 = vmatpush.msra.mxu0 %v63
    %118 = vmatpush.msra.mxu0 %v38
    %119 = vmatpush.msra.mxu0 %v37
    %120 = vmatpush.msra.mxu0 %v36
    %121 = vmatpush.msra.mxu0 %v35
    %122 = vmatpush.msra.mxu0 %v34
    %123 = vmatpush.msra.mxu0 %v33
    %124 = vmatmul.f32.gmra.mxu0 %v103
    %v125 = vpop.f32.mrf.mxu0
    %v126 = vadd.f32 0.0, %v125
    %127 = vmatmul.f32.gmra.mxu0 %v106
    %v128 = vpop.f32.mrf.mxu0
    %v129 = vadd.f32 0.0, %v128
    %130 = vdwg.mxu0
    %v131 = vld [vmem:[%s4 + $0x1e] sm:$0xff]
    %v132 = vld [vmem:[%s4 + $0x26] sm:$0xff]
    %v133 = vld [vmem:[%s2] sm:$0x1]
    %vm134 = vcmp.ne.f32.partialorder %v133, 0.0
    %v135 = vmin.f32 %v131, -1e+09
    %v136 = vmin.f32 %v132, -1e+09
    %v137 = vsel %vm134, 1, 0
    %v138 = vperm.slane %v137, 0
    %vm139 = vcmp.eq.s32.totalorder %v138, 1
    %v140 = vsel %vm139, %v131, %v135
    %v141 = vsel %vm139, %v132, %v136
    %v142 = vld [vmem:[%s4] sm:$0xff]
    %v143 = vld [vmem:[%s4 + $0x8] sm:$0xff]
    %v144 = vadd.f32 %v83, %v142
    %v145 = vadd.f32 %v86, %v143
    %v146 = vld [vmem:[%s4 + $0x10] sm:$0x1]
    %v147 = vld [vmem:[%s4 + $0x11] sm:$0x1]
    %vm148 = vcmask 261120
    %v149 = vsel %vm148, %v144, 0.0
    %150 = vadd.xlane.f32.xlu0 %v149
    %v151 = vpop.xlane.xlu0 %150
    %v152 = vsel %vm148, %v145, 0.0
    %153 = vadd.xlane.f32.xlu0 %v152
    %v154 = vpop.xlane.xlu0 %153
    %v155 = vrcp.pop 32.0
    %v156 = vmul.f32 32.0, %v155
    %v157 = vsub.f32 1.0, %v156
    %v158 = vmul.f32 %v155, %v157
    %v159 = vadd.f32 %v155, %v158
    %vm160 = vweird.f32 %v155
    %v161 = vsel %vm160, %v155, %v159
    %v162 = vmul.f32 %v151, %v161
    %v163 = vmul.f32 %v154, %v161
    %v164 = vsub.f32 %v144, %v162
    %v165 = vsub.f32 %v145, %v163
    %v166 = vmul.f32 %v164, %v164
    %v167 = vmul.f32 %v165, %v165
    %v168 = vsel %vm148, %v166, 0.0
    %169 = vadd.xlane.f32.xlu0 %v168
    %v170 = vpop.xlane.xlu0 %169
    %v171 = vsel %vm148, %v167, 0.0
    %172 = vadd.xlane.f32.xlu0 %v171
    %v173 = vpop.xlane.xlu0 %172
    %v174 = vmul.f32 %v170, %v161
    %v175 = vmul.f32 %v173, %v161
    %v176 = vadd.f32 %v174, 1e-06
    %v177 = vadd.f32 %v175, 1e-06
    %v178 = vrsqrt.pop %v176
    %v179 = vmul.f32 %v178, %v176
    %v180 = vmul.f32 %v179, %v178
    %v181 = vmul.f32 0.5, %v180
    %v182 = vsub.f32 1.5, %v181
    %v183 = vmul.f32 %v178, %v182
    %vm184 = vweird.f32 %v176
    %vm185 = vweird.f32 %v178
    %vm186 = vmor %vm184, %vm185
    %v187 = vsel %vm186, %v178, %v183
    %v188 = vrsqrt.pop %v177
    %v189 = vmul.f32 %v188, %v177
    %v190 = vmul.f32 %v189, %v188
    %v191 = vmul.f32 0.5, %v190
    %v192 = vsub.f32 1.5, %v191
    %v193 = vmul.f32 %v188, %v192
    %vm194 = vweird.f32 %v177
    %vm195 = vweird.f32 %v188
    %vm196 = vmor %vm194, %vm195
    %v197 = vsel %vm196, %v188, %v193
    %v198 = vmul.f32 %v164, %v187
    %v199 = vmul.f32 %v165, %v197
    %v200 = vperm.slane %v146, 0
    %v201 = vmul.f32 %v198, %v200
    %v202 = vmul.f32 %v199, %v200
    %v203 = vperm.slane %v147, 0
    %v204 = vadd.f32 %v201, %v203
    %v205 = vadd.f32 %v202, %v203
    %v206 = vld [vmem:[%s5] sm:$0xff]
    %v207 = vld [vmem:[%s5 + $0x8] sm:$0xff]
    %v208 = vld [vmem:[%s5 + $0x10] sm:$0xff]
    %v209 = vld [vmem:[%s5 + $0x18] sm:$0xff]
    %v210 = vld [vmem:[%s5 + $0x20] sm:$0xff]
    %v211 = vld [vmem:[%s5 + $0x28] sm:$0xff]
    %v212 = vld [vmem:[%s5 + $0x30] sm:$0xff]
    %v213 = vld [vmem:[%s5 + $0x38] sm:$0xff]
    %v214 = vld [vmem:[%s5 + $0x40] sm:$0x1]
    %v215 = vld [vmem:[%s5 + $0x48] sm:$0x1]
    %v216 = vld [vmem:[%s4 + $0x12] sm:$0x1]
    %v217 = vld [vmem:[%s4 + $0x13] sm:$0x1]
    %v218 = vld [vmem:[%s4 + $0x14] sm:$0x1]
    %v219 = vld [vmem:[%s4 + $0x15] sm:$0x1]
    %v220 = vld [vmem:[%s4 + $0x16] sm:$0x1]
    %v221 = vld [vmem:[%s4 + $0x17] sm:$0x1]
    %v222 = vperm.slane %v214, 0
    %v224 = vsel %vm148, %v204, 0
    %v227 = vsel %vm148, %v205, 0
    %229 = vmatpush.msra.mxu0 0.0
    %230 = vmatpush.msra.mxu0 0.0
    %231 = vmatpush.msra.mxu0 0.0
    %232 = vmatpush.msra.mxu0 0.0
    %233 = vmatpush.msra.mxu0 0.0
    %234 = vmatpush.msra.mxu0 0.0
    %235 = vmatpush.msra.mxu0 0.0
    %236 = vmatpush.msra.mxu0 0.0
    %237 = vmatpush.msra.mxu0 0.0
    %238 = vmatpush.msra.mxu0 0.0
    %239 = vmatpush.msra.mxu0 0.0
    %240 = vmatpush.msra.mxu0 0.0
    %241 = vmatpush.msra.mxu0 %v212
    %242 = vmatpush.msra.mxu0 %v210
    %243 = vmatpush.msra.mxu0 %v208
    %244 = vmatpush.msra.mxu0 %v206
    %245 = vmatmul.f32.gmra.mxu0 %v224
    %v246 = vpop.f32.mrf.mxu0
    %v247 = vadd.f32 %v222, %v246
    %248 = vmatmul.f32.gmra.mxu0 %v227
    %v249 = vpop.f32.mrf.mxu0
    %v250 = vadd.f32 %v222, %v249
    %251 = vdwg.mxu0
    %v252 = vmul.f32 %v247, 0.25
    %v253 = vmul.f32 %v250, 0.25
    %256 = vrot.lane.b32.xlu0 %v247, 96
    %v257 = vpop.permute.xlu0 %256
    %258 = vrot.lane.b32.xlu0 %v250, 96
    %v259 = vpop.permute.xlu0 %258
    %vm260 = vcmask 130048
    %v262 = vsel %vm260, %v252, 0
    %v265 = vsel %vm260, %v253, 0
    %v267 = vsel %vm260, %v257, 0
    %v269 = vsel %vm260, %v259, 0
    %271 = vmatpush.xpose.msra.mxu0 0.0
    %272 = vmatpush.xpose.msra.mxu0 0.0
    %273 = vmatpush.xpose.msra.mxu0 0.0
    %274 = vmatpush.xpose.msra.mxu0 0.0
    %275 = vmatpush.xpose.msra.mxu0 0.0
    %276 = vmatpush.xpose.msra.mxu0 0.0
    %277 = vmatpush.xpose.msra.mxu0 0.0
    %278 = vmatpush.xpose.msra.mxu0 0.0
    %279 = vmatpush.xpose.msra.mxu0 0.0
    %280 = vmatpush.xpose.msra.mxu0 0.0
    %281 = vmatpush.xpose.msra.mxu0 0.0
    %282 = vmatpush.xpose.msra.mxu0 0.0
    %283 = vmatpush.xpose.msra.mxu0 0.0
    %284 = vmatpush.xpose.msra.mxu0 0.0
    %285 = vmatpush.xpose.msra.mxu0 %v269
    %286 = vmatpush.xpose.msra.mxu0 %v267
    %287 = vmatmul.f32.gmra.mxu0 %v262
    %v288 = vpop.f32.mrf.mxu0
    %v289 = vadd.f32 %v140, %v288
    %290 = vmatmul.f32.gmra.mxu0 %v265
    %v291 = vpop.f32.mrf.mxu0
    %v292 = vadd.f32 %v141, %v291
    %293 = vdwg.mxu0
    %v294 = vsel %vm260, %v289, -inf
    %295 = vmax.xlane.f32.xlu0 %v294
    %v296 = vpop.xlane.xlu0 %295
    %v297 = vsel %vm260, %v292, -inf
    %298 = vmax.xlane.f32.xlu0 %v297
    %v299 = vpop.xlane.xlu0 %298
    %v300 = vsub.f32 %v289, %v296
    %v301 = vsub.f32 %v292, %v299
    %v302 = vmul.f32 %v300, 1.442695
    %v303 = vpow.pop %v302
    %v304 = vmul.f32 %v301, 1.442695
    %v305 = vpow.pop %v304
    %v306 = vsel %vm260, %v303, 0.0
    %307 = vadd.xlane.f32.xlu0 %v306
    %v308 = vpop.xlane.xlu0 %307
    %v309 = vsel %vm260, %v305, 0.0
    %310 = vadd.xlane.f32.xlu0 %v309
    %v311 = vpop.xlane.xlu0 %310
    %v312 = vrcp.pop %v308
    %v313 = vrcp.pop %v311
    %v314 = vmul.f32 %v303, %v312
    %v315 = vmul.f32 %v305, %v313
    %316 = vrot.lane.b32.xlu0 %v247, 64
    %v317 = vpop.permute.xlu0 %316
    %318 = vrot.lane.b32.xlu0 %v250, 64
    %v319 = vpop.permute.xlu0 %318
    %v323 = vsel %vm260, %v314, 0
    %v326 = vsel %vm260, %v315, 0
    %328 = vmatpush.msra.mxu0 0.0
    %329 = vmatpush.msra.mxu0 0.0
    %330 = vmatpush.msra.mxu0 0.0
    %331 = vmatpush.msra.mxu0 0.0
    %332 = vmatpush.msra.mxu0 0.0
    %333 = vmatpush.msra.mxu0 0.0
    %334 = vmatpush.msra.mxu0 0.0
    %335 = vmatpush.msra.mxu0 0.0
    %336 = vmatpush.msra.mxu0 0.0
    %337 = vmatpush.msra.mxu0 0.0
    %338 = vmatpush.msra.mxu0 0.0
    %339 = vmatpush.msra.mxu0 0.0
    %340 = vmatpush.msra.mxu0 0.0
    %341 = vmatpush.msra.mxu0 0.0
    %342 = vmatpush.msra.mxu0 %v319
    %343 = vmatpush.msra.mxu0 %v317
    %344 = vmatmul.f32.gmra.mxu0 %v323
    %v345 = vpop.f32.mrf.mxu0
    %v346 = vadd.f32 0.0, %v345
    %347 = vmatmul.f32.gmra.mxu0 %v326
    %v348 = vpop.f32.mrf.mxu0
    %v349 = vadd.f32 0.0, %v348
    %350 = vdwg.mxu0
    %351 = vrot.lane.b32.xlu0 %v252, 112
    %v352 = vpop.permute.xlu0 %351
    %353 = vrot.lane.b32.xlu0 %v253, 112
    %v354 = vpop.permute.xlu0 %353
    %355 = vrot.lane.b32.xlu0 %v247, 80
    %v356 = vpop.permute.xlu0 %355
    %357 = vrot.lane.b32.xlu0 %v250, 80
    %v358 = vpop.permute.xlu0 %357
    %v359 = vsel %vm260, %v352, 0
    %v361 = vsel %vm260, %v354, 0
    %v363 = vsel %vm260, %v356, 0
    %v365 = vsel %vm260, %v358, 0
    %367 = vmatpush.xpose.msra.mxu0 0.0
    %368 = vmatpush.xpose.msra.mxu0 0.0
    %369 = vmatpush.xpose.msra.mxu0 0.0
    %370 = vmatpush.xpose.msra.mxu0 0.0
    %371 = vmatpush.xpose.msra.mxu0 0.0
    %372 = vmatpush.xpose.msra.mxu0 0.0
    %373 = vmatpush.xpose.msra.mxu0 0.0
    %374 = vmatpush.xpose.msra.mxu0 0.0
    %375 = vmatpush.xpose.msra.mxu0 0.0
    %376 = vmatpush.xpose.msra.mxu0 0.0
    %377 = vmatpush.xpose.msra.mxu0 0.0
    %378 = vmatpush.xpose.msra.mxu0 0.0
    %379 = vmatpush.xpose.msra.mxu0 0.0
    %380 = vmatpush.xpose.msra.mxu0 0.0
    %381 = vmatpush.xpose.msra.mxu0 %v365
    %382 = vmatpush.xpose.msra.mxu0 %v363
    %383 = vmatmul.f32.gmra.mxu0 %v359
    %v384 = vpop.f32.mrf.mxu0
    %v385 = vadd.f32 %v140, %v384
    %386 = vmatmul.f32.gmra.mxu0 %v361
    %v387 = vpop.f32.mrf.mxu0
    %v388 = vadd.f32 %v141, %v387
    %389 = vdwg.mxu0
    %v390 = vsel %vm260, %v385, -inf
    %391 = vmax.xlane.f32.xlu0 %v390
    %v392 = vpop.xlane.xlu0 %391
    %v393 = vsel %vm260, %v388, -inf
    %394 = vmax.xlane.f32.xlu0 %v393
    %v395 = vpop.xlane.xlu0 %394
    %v396 = vsub.f32 %v385, %v392
    %v397 = vsub.f32 %v388, %v395
    %v398 = vmul.f32 %v396, 1.442695
    %v399 = vpow.pop %v398
    %v400 = vmul.f32 %v397, 1.442695
    %v401 = vpow.pop %v400
    %v402 = vsel %vm260, %v399, 0.0
    %403 = vadd.xlane.f32.xlu0 %v402
    %v404 = vpop.xlane.xlu0 %403
    %v405 = vsel %vm260, %v401, 0.0
    %406 = vadd.xlane.f32.xlu0 %v405
    %v407 = vpop.xlane.xlu0 %406
    %v408 = vrcp.pop %v404
    %v409 = vrcp.pop %v407
    %v410 = vmul.f32 %v399, %v408
    %v411 = vmul.f32 %v401, %v409
    %412 = vrot.lane.b32.xlu0 %v247, 48
    %v413 = vpop.permute.xlu0 %412
    %414 = vrot.lane.b32.xlu0 %v250, 48
    %v415 = vpop.permute.xlu0 %414
    %v419 = vsel %vm260, %v410, 0
    %v422 = vsel %vm260, %v411, 0
    %424 = vmatpush.msra.mxu0 0.0
    %425 = vmatpush.msra.mxu0 0.0
    %426 = vmatpush.msra.mxu0 0.0
    %427 = vmatpush.msra.mxu0 0.0
    %428 = vmatpush.msra.mxu0 0.0
    %429 = vmatpush.msra.mxu0 0.0
    %430 = vmatpush.msra.mxu0 0.0
    %431 = vmatpush.msra.mxu0 0.0
    %432 = vmatpush.msra.mxu0 0.0
    %433 = vmatpush.msra.mxu0 0.0
    %434 = vmatpush.msra.mxu0 0.0
    %435 = vmatpush.msra.mxu0 0.0
    %436 = vmatpush.msra.mxu0 0.0
    %437 = vmatpush.msra.mxu0 0.0
    %438 = vmatpush.msra.mxu0 %v415
    %439 = vmatpush.msra.mxu0 %v413
    %440 = vmatmul.f32.gmra.mxu0 %v419
    %v441 = vpop.f32.mrf.mxu0
    %v442 = vadd.f32 0.0, %v441
    %443 = vmatmul.f32.gmra.mxu0 %v422
    %v444 = vpop.f32.mrf.mxu0
    %v445 = vadd.f32 0.0, %v444
    %446 = vdwg.mxu0
    %449 = vrot.lane.b32.xlu0 %v442, 16
    %v450 = vpop.permute.xlu0 %449
    %451 = vrot.lane.b32.xlu0 %v445, 16
    %v452 = vpop.permute.xlu0 %451
    %v455 = vsel %vm260, %v346, %v450
    %v456 = vsel %vm260, %v349, %v452
    %v457 = vperm.slane %v216, 0
    %462 = vrot.lane.b32.xlu0 %v206, 32
    %v463 = vpop.permute.xlu0 %462
    %464 = vrot.lane.b32.xlu0 %v208, 32
    %v465 = vpop.permute.xlu0 %464
    %466 = vrot.lane.b32.xlu0 %v210, 32
    %v467 = vpop.permute.xlu0 %466
    %468 = vrot.lane.b32.xlu0 %v212, 32
    %v469 = vpop.permute.xlu0 %468
    %v475 = vsel %vm148, %v455, 0
    %v478 = vsel %vm148, %v456, 0
    %480 = vmatpush.msra.mxu0 0.0
    %481 = vmatpush.msra.mxu0 0.0
    %482 = vmatpush.msra.mxu0 0.0
    %483 = vmatpush.msra.mxu0 0.0
    %484 = vmatpush.msra.mxu0 0.0
    %485 = vmatpush.msra.mxu0 0.0
    %486 = vmatpush.msra.mxu0 0.0
    %487 = vmatpush.msra.mxu0 0.0
    %488 = vmatpush.msra.mxu0 0.0
    %489 = vmatpush.msra.mxu0 0.0
    %490 = vmatpush.msra.mxu0 0.0
    %491 = vmatpush.msra.mxu0 0.0
    %492 = vmatpush.msra.mxu0 %v469
    %493 = vmatpush.msra.mxu0 %v467
    %494 = vmatpush.msra.mxu0 %v465
    %495 = vmatpush.msra.mxu0 %v463
    %496 = vmatmul.f32.gmra.mxu0 %v475
    %v497 = vpop.f32.mrf.mxu0
    %v498 = vadd.f32 %v457, %v497
    %499 = vmatmul.f32.gmra.mxu0 %v478
    %v500 = vpop.f32.mrf.mxu0
    %v501 = vadd.f32 %v457, %v500
    %502 = vdwg.mxu0
    %v503 = vadd.f32 %v498, %v204
    %v504 = vadd.f32 %v501, %v205
    %v505 = vsel %vm148, %v503, 0.0
    %506 = vadd.xlane.f32.xlu0 %v505
    %v507 = vpop.xlane.xlu0 %506
    %v508 = vsel %vm148, %v504, 0.0
    %509 = vadd.xlane.f32.xlu0 %v508
    %v510 = vpop.xlane.xlu0 %509
    %v511 = vmul.f32 %v507, %v161
    %v512 = vmul.f32 %v510, %v161
    %v513 = vsub.f32 %v503, %v511
    %v514 = vsub.f32 %v504, %v512
    %v515 = vmul.f32 %v513, %v513
    %v516 = vmul.f32 %v514, %v514
    %v517 = vsel %vm148, %v515, 0.0
    %518 = vadd.xlane.f32.xlu0 %v517
    %v519 = vpop.xlane.xlu0 %518
    %v520 = vsel %vm148, %v516, 0.0
    %521 = vadd.xlane.f32.xlu0 %v520
    %v522 = vpop.xlane.xlu0 %521
    %v523 = vmul.f32 %v519, %v161
    %v524 = vmul.f32 %v522, %v161
    %v525 = vadd.f32 %v523, 1e-06
    %v526 = vadd.f32 %v524, 1e-06
    %v527 = vrsqrt.pop %v525
    %v528 = vmul.f32 %v527, %v525
    %v529 = vmul.f32 %v528, %v527
    %v530 = vmul.f32 0.5, %v529
    %v531 = vsub.f32 1.5, %v530
    %v532 = vmul.f32 %v527, %v531
    %vm533 = vweird.f32 %v525
    %vm534 = vweird.f32 %v527
    %vm535 = vmor %vm533, %vm534
    %v536 = vsel %vm535, %v527, %v532
    %v537 = vrsqrt.pop %v526
    %v538 = vmul.f32 %v537, %v526
    %v539 = vmul.f32 %v538, %v537
    %v540 = vmul.f32 0.5, %v539
    %v541 = vsub.f32 1.5, %v540
    %v542 = vmul.f32 %v537, %v541
    %vm543 = vweird.f32 %v526
    %vm544 = vweird.f32 %v537
    %vm545 = vmor %vm543, %vm544
    %v546 = vsel %vm545, %v537, %v542
    %v547 = vmul.f32 %v513, %v536
    %v548 = vmul.f32 %v514, %v546
    %v549 = vperm.slane %v217, 0
    %v550 = vmul.f32 %v547, %v549
    %v551 = vmul.f32 %v548, %v549
    %v552 = vperm.slane %v218, 0
    %v553 = vadd.f32 %v550, %v552
    %v554 = vadd.f32 %v551, %v552
    %v555 = vperm.slane %v215, 0
    %v557 = vsel %vm148, %v553, 0
    %v560 = vsel %vm148, %v554, 0
    %562 = vmatpush.msra.mxu0 0.0
    %563 = vmatpush.msra.mxu0 0.0
    %564 = vmatpush.msra.mxu0 0.0
    %565 = vmatpush.msra.mxu0 0.0
    %566 = vmatpush.msra.mxu0 0.0
    %567 = vmatpush.msra.mxu0 0.0
    %568 = vmatpush.msra.mxu0 0.0
    %569 = vmatpush.msra.mxu0 0.0
    %570 = vmatpush.msra.mxu0 0.0
    %571 = vmatpush.msra.mxu0 0.0
    %572 = vmatpush.msra.mxu0 0.0
    %573 = vmatpush.msra.mxu0 0.0
    %574 = vmatpush.msra.mxu0 %v213
    %575 = vmatpush.msra.mxu0 %v211
    %576 = vmatpush.msra.mxu0 %v209
    %577 = vmatpush.msra.mxu0 %v207
    %578 = vmatmul.f32.gmra.mxu0 %v557
    %v579 = vpop.f32.mrf.mxu0
    %v580 = vadd.f32 %v555, %v579
    %581 = vmatmul.f32.gmra.mxu0 %v560
    %v582 = vpop.f32.mrf.mxu0
    %v583 = vadd.f32 %v555, %v582
    %584 = vdwg.mxu0
    %v585 = vmul.f32 %v580, 0.5
    %v586 = vmul.f32 %v583, 0.5
    %v587 = vmul.f32 %v580, 0.044715
    %v588 = vmul.f32 %v583, 0.044715
    %v589 = vmul.f32 %v587, %v580
    %v590 = vmul.f32 %v588, %v583
    %v591 = vmul.f32 %v589, %v580
    %v592 = vmul.f32 %v590, %v583
    %v593 = vadd.f32 %v580, %v591
    %v594 = vadd.f32 %v583, %v592
    %v595 = vmul.f32 %v593, 0.7978846
    %v596 = vmul.f32 %v594, 0.7978846
    %v597 = vtanh.pop %v595
    %v598 = vtanh.pop %v596
    %v599 = vadd.f32 %v597, 1.0
    %v600 = vadd.f32 %v598, 1.0
    %v601 = vmul.f32 %v585, %v599
    %v602 = vmul.f32 %v586, %v600
    %v603 = vld [vmem:[%s6] sm:$0xff]
    %v604 = vld [vmem:[%s6 + $0x8] sm:$0xff]
    %v605 = vld [vmem:[%s6 + $0x10] sm:$0xff]
    %v606 = vld [vmem:[%s6 + $0x18] sm:$0xff]
    %v607 = vld [vmem:[%s6 + $0x20] sm:$0xff]
    %v608 = vld [vmem:[%s6 + $0x28] sm:$0xff]
    %v609 = vld [vmem:[%s6 + $0x30] sm:$0xff]
    %v610 = vld [vmem:[%s6 + $0x38] sm:$0xff]
    %v611 = vld [vmem:[%s6 + $0x40] sm:$0xff]
    %v612 = vld [vmem:[%s6 + $0x48] sm:$0xff]
    %v613 = vld [vmem:[%s6 + $0x50] sm:$0xff]
    %v614 = vld [vmem:[%s6 + $0x58] sm:$0xff]
    %v615 = vld [vmem:[%s6 + $0x60] sm:$0xff]
    %v616 = vld [vmem:[%s6 + $0x68] sm:$0xff]
    %v617 = vld [vmem:[%s6 + $0x70] sm:$0xff]
    %v618 = vld [vmem:[%s6 + $0x78] sm:$0xff]
    %v619 = vperm.slane %v221, 0
    %620 = vmatpush.msra.mxu0 %v618
    %621 = vmatpush.msra.mxu0 %v617
    %622 = vmatpush.msra.mxu0 %v616
    %623 = vmatpush.msra.mxu0 %v615
    %624 = vmatpush.msra.mxu0 %v614
    %625 = vmatpush.msra.mxu0 %v613
    %626 = vmatpush.msra.mxu0 %v612
    %627 = vmatpush.msra.mxu0 %v611
    %628 = vmatpush.msra.mxu0 %v610
    %629 = vmatpush.msra.mxu0 %v609
    %630 = vmatpush.msra.mxu0 %v608
    %631 = vmatpush.msra.mxu0 %v607
    %632 = vmatpush.msra.mxu0 %v606
    %633 = vmatpush.msra.mxu0 %v605
    %634 = vmatpush.msra.mxu0 %v604
    %635 = vmatpush.msra.mxu0 %v603
    %636 = vmatmul.f32.gmra.mxu0 %v601
    %v637 = vpop.f32.mrf.mxu0
    %v638 = vadd.f32 %v619, %v637
    %639 = vmatmul.f32.gmra.mxu0 %v602
    %v640 = vpop.f32.mrf.mxu0
    %v641 = vadd.f32 %v619, %v640
    %642 = vdwg.mxu0
    %v643 = vadd.f32 %v638, %v553
    %v644 = vadd.f32 %v641, %v554
    %v645 = vsel %vm148, %v643, 0.0
    %646 = vadd.xlane.f32.xlu0 %v645
    %v647 = vpop.xlane.xlu0 %646
    %v648 = vsel %vm148, %v644, 0.0
    %649 = vadd.xlane.f32.xlu0 %v648
    %v650 = vpop.xlane.xlu0 %649
    %v651 = vmul.f32 %v647, %v161
    %v652 = vmul.f32 %v650, %v161
    %v653 = vsub.f32 %v643, %v651
    %v654 = vsub.f32 %v644, %v652
    %v655 = vmul.f32 %v653, %v653
    %v656 = vmul.f32 %v654, %v654
    %v657 = vsel %vm148, %v655, 0.0
    %658 = vadd.xlane.f32.xlu0 %v657
    %v659 = vpop.xlane.xlu0 %658
    %v660 = vsel %vm148, %v656, 0.0
    %661 = vadd.xlane.f32.xlu0 %v660
    %v662 = vpop.xlane.xlu0 %661
    %v663 = vmul.f32 %v659, %v161
    %v664 = vmul.f32 %v662, %v161
    %v665 = vadd.f32 %v663, 1e-06
    %v666 = vadd.f32 %v664, 1e-06
    %v667 = vrsqrt.pop %v665
    %v668 = vmul.f32 %v667, %v665
    %v669 = vmul.f32 %v668, %v667
    %v670 = vmul.f32 0.5, %v669
    %v671 = vsub.f32 1.5, %v670
    %v672 = vmul.f32 %v667, %v671
    %vm673 = vweird.f32 %v665
    %vm674 = vweird.f32 %v667
    %vm675 = vmor %vm673, %vm674
    %v676 = vsel %vm675, %v667, %v672
    %v677 = vrsqrt.pop %v666
    %v678 = vmul.f32 %v677, %v666
    %v679 = vmul.f32 %v678, %v677
    %v680 = vmul.f32 0.5, %v679
    %v681 = vsub.f32 1.5, %v680
    %v682 = vmul.f32 %v677, %v681
    %vm683 = vweird.f32 %v666
    %vm684 = vweird.f32 %v677
    %vm685 = vmor %vm683, %vm684
    %v686 = vsel %vm685, %v677, %v682
    %v687 = vmul.f32 %v653, %v676
    %v688 = vmul.f32 %v654, %v686
    %v689 = vperm.slane %v219, 0
    %v690 = vmul.f32 %v687, %v689
    %v691 = vmul.f32 %v688, %v689
    %v692 = vperm.slane %v220, 0
    %v693 = vadd.f32 %v690, %v692
    %v694 = vadd.f32 %v691, %v692
    %s695 = scalar_lea.vmem %s5, 80
    %v696 = vld [vmem:[%s695] sm:$0xff]
    %v697 = vld [vmem:[%s695 + $0x8] sm:$0xff]
    %v698 = vld [vmem:[%s695 + $0x10] sm:$0xff]
    %v699 = vld [vmem:[%s695 + $0x18] sm:$0xff]
    %v700 = vld [vmem:[%s695 + $0x20] sm:$0xff]
    %v701 = vld [vmem:[%s695 + $0x28] sm:$0xff]
    %v702 = vld [vmem:[%s695 + $0x30] sm:$0xff]
    %v703 = vld [vmem:[%s695 + $0x38] sm:$0xff]
    %v704 = vld [vmem:[%s695 + $0x40] sm:$0x1]
    %v705 = vld [vmem:[%s695 + $0x48] sm:$0x1]
    %v706 = vld [vmem:[%s4 + $0x18] sm:$0x1]
    %v707 = vld [vmem:[%s4 + $0x19] sm:$0x1]
    %v708 = vld [vmem:[%s4 + $0x1a] sm:$0x1]
    %v709 = vld [vmem:[%s4 + $0x1b] sm:$0x1]
    %v710 = vld [vmem:[%s4 + $0x1c] sm:$0x1]
    %v711 = vld [vmem:[%s4 + $0x1d] sm:$0x1]
    %v712 = vperm.slane %v704, 0
    %v714 = vsel %vm148, %v693, 0
    %v717 = vsel %vm148, %v694, 0
    %719 = vmatpush.msra.mxu0 0.0
    %720 = vmatpush.msra.mxu0 0.0
    %721 = vmatpush.msra.mxu0 0.0
    %722 = vmatpush.msra.mxu0 0.0
    %723 = vmatpush.msra.mxu0 0.0
    %724 = vmatpush.msra.mxu0 0.0
    %725 = vmatpush.msra.mxu0 0.0
    %726 = vmatpush.msra.mxu0 0.0
    %727 = vmatpush.msra.mxu0 0.0
    %728 = vmatpush.msra.mxu0 0.0
    %729 = vmatpush.msra.mxu0 0.0
    %730 = vmatpush.msra.mxu0 0.0
    %731 = vmatpush.msra.mxu0 %v702
    %732 = vmatpush.msra.mxu0 %v700
    %733 = vmatpush.msra.mxu0 %v698
    %734 = vmatpush.msra.mxu0 %v696
    %735 = vmatmul.f32.gmra.mxu0 %v714
    %v736 = vpop.f32.mrf.mxu0
    %v737 = vadd.f32 %v712, %v736
    %738 = vmatmul.f32.gmra.mxu0 %v717
    %v739 = vpop.f32.mrf.mxu0
    %v740 = vadd.f32 %v712, %v739
    %741 = vdwg.mxu0
    %v742 = vmul.f32 %v737, 0.25
    %v743 = vmul.f32 %v740, 0.25
    %746 = vrot.lane.b32.xlu0 %v737, 96
    %v747 = vpop.permute.xlu0 %746
    %748 = vrot.lane.b32.xlu0 %v740, 96
    %v749 = vpop.permute.xlu0 %748
    %v751 = vsel %vm260, %v742, 0
    %v754 = vsel %vm260, %v743, 0
    %v756 = vsel %vm260, %v747, 0
    %v758 = vsel %vm260, %v749, 0
    %760 = vmatpush.xpose.msra.mxu0 0.0
    %761 = vmatpush.xpose.msra.mxu0 0.0
    %762 = vmatpush.xpose.msra.mxu0 0.0
    %763 = vmatpush.xpose.msra.mxu0 0.0
    %764 = vmatpush.xpose.msra.mxu0 0.0
    %765 = vmatpush.xpose.msra.mxu0 0.0
    %766 = vmatpush.xpose.msra.mxu0 0.0
    %767 = vmatpush.xpose.msra.mxu0 0.0
    %768 = vmatpush.xpose.msra.mxu0 0.0
    %769 = vmatpush.xpose.msra.mxu0 0.0
    %770 = vmatpush.xpose.msra.mxu0 0.0
    %771 = vmatpush.xpose.msra.mxu0 0.0
    %772 = vmatpush.xpose.msra.mxu0 0.0
    %773 = vmatpush.xpose.msra.mxu0 0.0
    %774 = vmatpush.xpose.msra.mxu0 %v758
    %775 = vmatpush.xpose.msra.mxu0 %v756
    %776 = vmatmul.f32.gmra.mxu0 %v751
    %v777 = vpop.f32.mrf.mxu0
    %v778 = vadd.f32 %v140, %v777
    %779 = vmatmul.f32.gmra.mxu0 %v754
    %v780 = vpop.f32.mrf.mxu0
    %v781 = vadd.f32 %v141, %v780
    %782 = vdwg.mxu0
    %v783 = vsel %vm260, %v778, -inf
    %784 = vmax.xlane.f32.xlu0 %v783
    %v785 = vpop.xlane.xlu0 %784
    %v786 = vsel %vm260, %v781, -inf
    %787 = vmax.xlane.f32.xlu0 %v786
    %v788 = vpop.xlane.xlu0 %787
    %v789 = vsub.f32 %v778, %v785
    %v790 = vsub.f32 %v781, %v788
    %v791 = vmul.f32 %v789, 1.442695
    %v792 = vpow.pop %v791
    %v793 = vmul.f32 %v790, 1.442695
    %v794 = vpow.pop %v793
    %v795 = vsel %vm260, %v792, 0.0
    %796 = vadd.xlane.f32.xlu0 %v795
    %v797 = vpop.xlane.xlu0 %796
    %v798 = vsel %vm260, %v794, 0.0
    %799 = vadd.xlane.f32.xlu0 %v798
    %v800 = vpop.xlane.xlu0 %799
    %v801 = vrcp.pop %v797
    %v802 = vrcp.pop %v800
    %v803 = vmul.f32 %v792, %v801
    %v804 = vmul.f32 %v794, %v802
    %805 = vrot.lane.b32.xlu0 %v737, 64
    %v806 = vpop.permute.xlu0 %805
    %807 = vrot.lane.b32.xlu0 %v740, 64
    %v808 = vpop.permute.xlu0 %807
    %v812 = vsel %vm260, %v803, 0
    %v815 = vsel %vm260, %v804, 0
    %817 = vmatpush.msra.mxu0 0.0
    %818 = vmatpush.msra.mxu0 0.0
    %819 = vmatpush.msra.mxu0 0.0
    %820 = vmatpush.msra.mxu0 0.0
    %821 = vmatpush.msra.mxu0 0.0
    %822 = vmatpush.msra.mxu0 0.0
    %823 = vmatpush.msra.mxu0 0.0
    %824 = vmatpush.msra.mxu0 0.0
    %825 = vmatpush.msra.mxu0 0.0
    %826 = vmatpush.msra.mxu0 0.0
    %827 = vmatpush.msra.mxu0 0.0
    %828 = vmatpush.msra.mxu0 0.0
    %829 = vmatpush.msra.mxu0 0.0
    %830 = vmatpush.msra.mxu0 0.0
    %831 = vmatpush.msra.mxu0 %v808
    %832 = vmatpush.msra.mxu0 %v806
    %833 = vmatmul.f32.gmra.mxu0 %v812
    %v834 = vpop.f32.mrf.mxu0
    %v835 = vadd.f32 0.0, %v834
    %836 = vmatmul.f32.gmra.mxu0 %v815
    %v837 = vpop.f32.mrf.mxu0
    %v838 = vadd.f32 0.0, %v837
    %839 = vdwg.mxu0
    %840 = vrot.lane.b32.xlu0 %v742, 112
    %v841 = vpop.permute.xlu0 %840
    %842 = vrot.lane.b32.xlu0 %v743, 112
    %v843 = vpop.permute.xlu0 %842
    %844 = vrot.lane.b32.xlu0 %v737, 80
    %v845 = vpop.permute.xlu0 %844
    %846 = vrot.lane.b32.xlu0 %v740, 80
    %v847 = vpop.permute.xlu0 %846
    %v848 = vsel %vm260, %v841, 0
    %v850 = vsel %vm260, %v843, 0
    %v852 = vsel %vm260, %v845, 0
    %v854 = vsel %vm260, %v847, 0
    %856 = vmatpush.xpose.msra.mxu0 0.0
    %857 = vmatpush.xpose.msra.mxu0 0.0
    %858 = vmatpush.xpose.msra.mxu0 0.0
    %859 = vmatpush.xpose.msra.mxu0 0.0
    %860 = vmatpush.xpose.msra.mxu0 0.0
    %861 = vmatpush.xpose.msra.mxu0 0.0
    %862 = vmatpush.xpose.msra.mxu0 0.0
    %863 = vmatpush.xpose.msra.mxu0 0.0
    %864 = vmatpush.xpose.msra.mxu0 0.0
    %865 = vmatpush.xpose.msra.mxu0 0.0
    %866 = vmatpush.xpose.msra.mxu0 0.0
    %867 = vmatpush.xpose.msra.mxu0 0.0
    %868 = vmatpush.xpose.msra.mxu0 0.0
    %869 = vmatpush.xpose.msra.mxu0 0.0
    %870 = vmatpush.xpose.msra.mxu0 %v854
    %871 = vmatpush.xpose.msra.mxu0 %v852
    %872 = vmatmul.f32.gmra.mxu0 %v848
    %v873 = vpop.f32.mrf.mxu0
    %v874 = vadd.f32 %v140, %v873
    %875 = vmatmul.f32.gmra.mxu0 %v850
    %v876 = vpop.f32.mrf.mxu0
    %v877 = vadd.f32 %v141, %v876
    %878 = vdwg.mxu0
    %v879 = vsel %vm260, %v874, -inf
    %880 = vmax.xlane.f32.xlu0 %v879
    %v881 = vpop.xlane.xlu0 %880
    %v882 = vsel %vm260, %v877, -inf
    %883 = vmax.xlane.f32.xlu0 %v882
    %v884 = vpop.xlane.xlu0 %883
    %v885 = vsub.f32 %v874, %v881
    %v886 = vsub.f32 %v877, %v884
    %v887 = vmul.f32 %v885, 1.442695
    %v888 = vpow.pop %v887
    %v889 = vmul.f32 %v886, 1.442695
    %v890 = vpow.pop %v889
    %v891 = vsel %vm260, %v888, 0.0
    %892 = vadd.xlane.f32.xlu0 %v891
    %v893 = vpop.xlane.xlu0 %892
    %v894 = vsel %vm260, %v890, 0.0
    %895 = vadd.xlane.f32.xlu0 %v894
    %v896 = vpop.xlane.xlu0 %895
    %v897 = vrcp.pop %v893
    %v898 = vrcp.pop %v896
    %v899 = vmul.f32 %v888, %v897
    %v900 = vmul.f32 %v890, %v898
    %901 = vrot.lane.b32.xlu0 %v737, 48
    %v902 = vpop.permute.xlu0 %901
    %903 = vrot.lane.b32.xlu0 %v740, 48
    %v904 = vpop.permute.xlu0 %903
    %v908 = vsel %vm260, %v899, 0
    %v911 = vsel %vm260, %v900, 0
    %913 = vmatpush.msra.mxu0 0.0
    %914 = vmatpush.msra.mxu0 0.0
    %915 = vmatpush.msra.mxu0 0.0
    %916 = vmatpush.msra.mxu0 0.0
    %917 = vmatpush.msra.mxu0 0.0
    %918 = vmatpush.msra.mxu0 0.0
    %919 = vmatpush.msra.mxu0 0.0
    %920 = vmatpush.msra.mxu0 0.0
    %921 = vmatpush.msra.mxu0 0.0
    %922 = vmatpush.msra.mxu0 0.0
    %923 = vmatpush.msra.mxu0 0.0
    %924 = vmatpush.msra.mxu0 0.0
    %925 = vmatpush.msra.mxu0 0.0
    %926 = vmatpush.msra.mxu0 0.0
    %927 = vmatpush.msra.mxu0 %v904
    %928 = vmatpush.msra.mxu0 %v902
    %929 = vmatmul.f32.gmra.mxu0 %v908
    %v930 = vpop.f32.mrf.mxu0
    %v931 = vadd.f32 0.0, %v930
    %932 = vmatmul.f32.gmra.mxu0 %v911
    %v933 = vpop.f32.mrf.mxu0
    %v934 = vadd.f32 0.0, %v933
    %935 = vdwg.mxu0
    %938 = vrot.lane.b32.xlu0 %v931, 16
    %v939 = vpop.permute.xlu0 %938
    %940 = vrot.lane.b32.xlu0 %v934, 16
    %v941 = vpop.permute.xlu0 %940
    %v944 = vsel %vm260, %v835, %v939
    %v945 = vsel %vm260, %v838, %v941
    %v946 = vperm.slane %v706, 0
    %951 = vrot.lane.b32.xlu0 %v696, 32
    %v952 = vpop.permute.xlu0 %951
    %953 = vrot.lane.b32.xlu0 %v698, 32
    %v954 = vpop.permute.xlu0 %953
    %955 = vrot.lane.b32.xlu0 %v700, 32
    %v956 = vpop.permute.xlu0 %955
    %957 = vrot.lane.b32.xlu0 %v702, 32
    %v958 = vpop.permute.xlu0 %957
    %v964 = vsel %vm148, %v944, 0
    %v967 = vsel %vm148, %v945, 0
    %969 = vmatpush.msra.mxu0 0.0
    %970 = vmatpush.msra.mxu0 0.0
    %971 = vmatpush.msra.mxu0 0.0
    %972 = vmatpush.msra.mxu0 0.0
    %973 = vmatpush.msra.mxu0 0.0
    %974 = vmatpush.msra.mxu0 0.0
    %975 = vmatpush.msra.mxu0 0.0
    %976 = vmatpush.msra.mxu0 0.0
    %977 = vmatpush.msra.mxu0 0.0
    %978 = vmatpush.msra.mxu0 0.0
    %979 = vmatpush.msra.mxu0 0.0
    %980 = vmatpush.msra.mxu0 0.0
    %981 = vmatpush.msra.mxu0 %v958
    %982 = vmatpush.msra.mxu0 %v956
    %983 = vmatpush.msra.mxu0 %v954
    %984 = vmatpush.msra.mxu0 %v952
    %985 = vmatmul.f32.gmra.mxu0 %v964
    %v986 = vpop.f32.mrf.mxu0
    %v987 = vadd.f32 %v946, %v986
    %988 = vmatmul.f32.gmra.mxu0 %v967
    %v989 = vpop.f32.mrf.mxu0
    %v990 = vadd.f32 %v946, %v989
    %991 = vdwg.mxu0
    %v992 = vadd.f32 %v987, %v693
    %v993 = vadd.f32 %v990, %v694
    %v994 = vsel %vm148, %v992, 0.0
    %995 = vadd.xlane.f32.xlu0 %v994
    %v996 = vpop.xlane.xlu0 %995
    %v997 = vsel %vm148, %v993, 0.0
    %998 = vadd.xlane.f32.xlu0 %v997
    %v999 = vpop.xlane.xlu0 %998
    %v1000 = vmul.f32 %v996, %v161
    %v1001 = vmul.f32 %v999, %v161
    %v1002 = vsub.f32 %v992, %v1000
    %v1003 = vsub.f32 %v993, %v1001
    %v1004 = vmul.f32 %v1002, %v1002
    %v1005 = vmul.f32 %v1003, %v1003
    %v1006 = vsel %vm148, %v1004, 0.0
    %1007 = vadd.xlane.f32.xlu0 %v1006
    %v1008 = vpop.xlane.xlu0 %1007
    %v1009 = vsel %vm148, %v1005, 0.0
    %1010 = vadd.xlane.f32.xlu0 %v1009
    %v1011 = vpop.xlane.xlu0 %1010
    %v1012 = vmul.f32 %v1008, %v161
    %v1013 = vmul.f32 %v1011, %v161
    %v1014 = vadd.f32 %v1012, 1e-06
    %v1015 = vadd.f32 %v1013, 1e-06
    %v1016 = vrsqrt.pop %v1014
    %v1017 = vmul.f32 %v1016, %v1014
    %v1018 = vmul.f32 %v1017, %v1016
    %v1019 = vmul.f32 0.5, %v1018
    %v1020 = vsub.f32 1.5, %v1019
    %v1021 = vmul.f32 %v1016, %v1020
    %vm1022 = vweird.f32 %v1014
    %vm1023 = vweird.f32 %v1016
    %vm1024 = vmor %vm1022, %vm1023
    %v1025 = vsel %vm1024, %v1016, %v1021
    %v1026 = vrsqrt.pop %v1015
    %v1027 = vmul.f32 %v1026, %v1015
    %v1028 = vmul.f32 %v1027, %v1026
    %v1029 = vmul.f32 0.5, %v1028
    %v1030 = vsub.f32 1.5, %v1029
    %v1031 = vmul.f32 %v1026, %v1030
    %vm1032 = vweird.f32 %v1015
    %vm1033 = vweird.f32 %v1026
    %vm1034 = vmor %vm1032, %vm1033
    %v1035 = vsel %vm1034, %v1026, %v1031
    %v1036 = vmul.f32 %v1002, %v1025
    %v1037 = vmul.f32 %v1003, %v1035
    %v1038 = vperm.slane %v707, 0
    %v1039 = vmul.f32 %v1036, %v1038
    %v1040 = vmul.f32 %v1037, %v1038
    %v1041 = vperm.slane %v708, 0
    %v1042 = vadd.f32 %v1039, %v1041
    %v1043 = vadd.f32 %v1040, %v1041
    %v1044 = vperm.slane %v705, 0
    %v1046 = vsel %vm148, %v1042, 0
    %v1049 = vsel %vm148, %v1043, 0
    %1051 = vmatpush.msra.mxu0 0.0
    %1052 = vmatpush.msra.mxu0 0.0
    %1053 = vmatpush.msra.mxu0 0.0
    %1054 = vmatpush.msra.mxu0 0.0
    %1055 = vmatpush.msra.mxu0 0.0
    %1056 = vmatpush.msra.mxu0 0.0
    %1057 = vmatpush.msra.mxu0 0.0
    %1058 = vmatpush.msra.mxu0 0.0
    %1059 = vmatpush.msra.mxu0 0.0
    %1060 = vmatpush.msra.mxu0 0.0
    %1061 = vmatpush.msra.mxu0 0.0
    %1062 = vmatpush.msra.mxu0 0.0
    %1063 = vmatpush.msra.mxu0 %v703
    %1064 = vmatpush.msra.mxu0 %v701
    %1065 = vmatpush.msra.mxu0 %v699
    %1066 = vmatpush.msra.mxu0 %v697
    %1067 = vmatmul.f32.gmra.mxu0 %v1046
    %v1068 = vpop.f32.mrf.mxu0
    %v1069 = vadd.f32 %v1044, %v1068
    %1070 = vmatmul.f32.gmra.mxu0 %v1049
    %v1071 = vpop.f32.mrf.mxu0
    %v1072 = vadd.f32 %v1044, %v1071
    %1073 = vdwg.mxu0
    %v1074 = vmul.f32 %v1069, 0.5
    %v1075 = vmul.f32 %v1072, 0.5
    %v1076 = vmul.f32 %v1069, 0.044715
    %v1077 = vmul.f32 %v1072, 0.044715
    %v1078 = vmul.f32 %v1076, %v1069
    %v1079 = vmul.f32 %v1077, %v1072
    %v1080 = vmul.f32 %v1078, %v1069
    %v1081 = vmul.f32 %v1079, %v1072
    %v1082 = vadd.f32 %v1069, %v1080
    %v1083 = vadd.f32 %v1072, %v1081
    %v1084 = vmul.f32 %v1082, 0.7978846
    %v1085 = vmul.f32 %v1083, 0.7978846
    %v1086 = vtanh.pop %v1084
    %v1087 = vtanh.pop %v1085
    %v1088 = vadd.f32 %v1086, 1.0
    %v1089 = vadd.f32 %v1087, 1.0
    %v1090 = vmul.f32 %v1074, %v1088
    %v1091 = vmul.f32 %v1075, %v1089
    %s1092 = scalar_lea.vmem %s6, 128
    %v1093 = vld [vmem:[%s1092] sm:$0xff]
    %v1094 = vld [vmem:[%s1092 + $0x8] sm:$0xff]
    %v1095 = vld [vmem:[%s1092 + $0x10] sm:$0xff]
    %v1096 = vld [vmem:[%s1092 + $0x18] sm:$0xff]
    %v1097 = vld [vmem:[%s1092 + $0x20] sm:$0xff]
    %v1098 = vld [vmem:[%s1092 + $0x28] sm:$0xff]
    %v1099 = vld [vmem:[%s1092 + $0x30] sm:$0xff]
    %v1100 = vld [vmem:[%s1092 + $0x38] sm:$0xff]
    %v1101 = vld [vmem:[%s1092 + $0x40] sm:$0xff]
    %v1102 = vld [vmem:[%s1092 + $0x48] sm:$0xff]
    %v1103 = vld [vmem:[%s1092 + $0x50] sm:$0xff]
    %v1104 = vld [vmem:[%s1092 + $0x58] sm:$0xff]
    %v1105 = vld [vmem:[%s1092 + $0x60] sm:$0xff]
    %v1106 = vld [vmem:[%s1092 + $0x68] sm:$0xff]
    %v1107 = vld [vmem:[%s1092 + $0x70] sm:$0xff]
    %v1108 = vld [vmem:[%s1092 + $0x78] sm:$0xff]
    %v1109 = vperm.slane %v711, 0
    %1110 = vmatpush.msra.mxu0 %v1108
    %1111 = vmatpush.msra.mxu0 %v1107
    %1112 = vmatpush.msra.mxu0 %v1106
    %1113 = vmatpush.msra.mxu0 %v1105
    %1114 = vmatpush.msra.mxu0 %v1104
    %1115 = vmatpush.msra.mxu0 %v1103
    %1116 = vmatpush.msra.mxu0 %v1102
    %1117 = vmatpush.msra.mxu0 %v1101
    %1118 = vmatpush.msra.mxu0 %v1100
    %1119 = vmatpush.msra.mxu0 %v1099
    %1120 = vmatpush.msra.mxu0 %v1098
    %1121 = vmatpush.msra.mxu0 %v1097
    %1122 = vmatpush.msra.mxu0 %v1096
    %1123 = vmatpush.msra.mxu0 %v1095
    %1124 = vmatpush.msra.mxu0 %v1094
    %1125 = vmatpush.msra.mxu0 %v1093
    %1126 = vmatmul.f32.gmra.mxu0 %v1090
    %v1127 = vpop.f32.mrf.mxu0
    %v1128 = vadd.f32 %v1109, %v1127
    %1129 = vmatmul.f32.gmra.mxu0 %v1091
    %v1130 = vpop.f32.mrf.mxu0
    %v1131 = vadd.f32 %v1109, %v1130
    %1132 = vdwg.mxu0
    %v1133 = vadd.f32 %v1128, %v1042
    %v1134 = vadd.f32 %v1131, %v1043
    %v1135 = vsel %vm148, %v1133, 0.0
    %1136 = vadd.xlane.f32.xlu0 %v1135
    %v1137 = vpop.xlane.xlu0 %1136
    %v1138 = vsel %vm148, %v1134, 0.0
    %1139 = vadd.xlane.f32.xlu0 %v1138
    %v1140 = vpop.xlane.xlu0 %1139
    %v1141 = vmul.f32 %v1137, %v161
    %v1142 = vmul.f32 %v1140, %v161
    %v1143 = vsub.f32 %v1133, %v1141
    %v1144 = vsub.f32 %v1134, %v1142
    %v1145 = vmul.f32 %v1143, %v1143
    %v1146 = vmul.f32 %v1144, %v1144
    %v1147 = vsel %vm148, %v1145, 0.0
    %1148 = vadd.xlane.f32.xlu0 %v1147
    %v1149 = vpop.xlane.xlu0 %1148
    %v1150 = vsel %vm148, %v1146, 0.0
    %1151 = vadd.xlane.f32.xlu0 %v1150
    %v1152 = vpop.xlane.xlu0 %1151
    %v1153 = vmul.f32 %v1149, %v161
    %v1154 = vmul.f32 %v1152, %v161
    %v1155 = vadd.f32 %v1153, 1e-06
    %v1156 = vadd.f32 %v1154, 1e-06
    %v1157 = vrsqrt.pop %v1155
    %v1158 = vmul.f32 %v1157, %v1155
    %v1159 = vmul.f32 %v1158, %v1157
    %v1160 = vmul.f32 0.5, %v1159
    %v1161 = vsub.f32 1.5, %v1160
    %v1162 = vmul.f32 %v1157, %v1161
    %vm1163 = vweird.f32 %v1155
    %vm1164 = vweird.f32 %v1157
    %vm1165 = vmor %vm1163, %vm1164
    %v1166 = vsel %vm1165, %v1157, %v1162
    %v1167 = vrsqrt.pop %v1156
    %v1168 = vmul.f32 %v1167, %v1156
    %v1169 = vmul.f32 %v1168, %v1167
    %v1170 = vmul.f32 0.5, %v1169
    %v1171 = vsub.f32 1.5, %v1170
    %v1172 = vmul.f32 %v1167, %v1171
    %vm1173 = vweird.f32 %v1156
    %vm1174 = vweird.f32 %v1167
    %vm1175 = vmor %vm1173, %vm1174
    %v1176 = vsel %vm1175, %v1167, %v1172
    %v1177 = vmul.f32 %v1143, %v1166
    %v1178 = vmul.f32 %v1144, %v1176
    %v1179 = vperm.slane %v709, 0
    %v1180 = vmul.f32 %v1177, %v1179
    %v1181 = vmul.f32 %v1178, %v1179
    %v1182 = vperm.slane %v710, 0
    %v1183 = vadd.f32 %v1180, %v1182
    %v1184 = vadd.f32 %v1181, %v1182
    %vm1185 = vcmask 260096
    %1186 = vst.msk [vmem:[%s7] sm:$0x7f] %vm1185, %v1183
    %vm1187 = vcmask 261121
    %1188 = vst.msk [vmem:[%s8 - $0x1] sm:$0xfe] %vm1187, %v83
    %1189 = vst.msk [vmem:[%s9] sm:$0x7f] %vm1185, %v126
    %1190 = vst.msk [vmem:[#allocation2] sm:$0xff] %vm148, %v83
    %1192 = vrot.lane.b32.xlu0 %v1183, 32
    %v1193 = vpop.permute.xlu0 %1192
    %vm1195 = vcmask 523520
    %1196 = vst.msk [vmem:[#allocation2] sm:$0xff] %vm1195, %v1193
    %s1197 = scalar_lea.vmem %s7, 8
    %1198 = vst.msk [vmem:[%s1197] sm:$0x7f] %vm1185, %v1184
    %s1199 = scalar_lea.vmem %s8, 8
    %1200 = vst.msk [vmem:[%s1199 - $0x1] sm:$0xfe] %vm1187, %v86
    %s1201 = scalar_lea.vmem %s9, 8
    %1202 = vst.msk [vmem:[%s1201] sm:$0x7f] %vm1185, %v129
    %s1203 = scalar_lea.vmem [#allocation2], 8
    %1204 = vst.msk [vmem:[%s1203] sm:$0xff] %vm148, %v86
    %1206 = vrot.lane.b32.xlu0 %v1184, 32
    %v1207 = vpop.permute.xlu0 %1206
    %1209 = vst.msk [vmem:[%s1203] sm:$0xff] %vm1195, %v1207
    // Predicated region
    $region30: #{basic_cl4rec_forward.1} parent=1 // pred_check
      _
    $region31: #{basic_cl4rec_forward.1} parent=1 // pred_check_branch
      %1211 = sbr.rel (0) target = $region33
    $region32: #{basic_cl4rec_forward.1} parent=1 // pred_region
      _
    $region33: #{basic_cl4rec_forward.1} parent=1 // pred_fallthru
      _
    // Predicated region
    $region34: #{basic_cl4rec_forward.1} parent=1 // pred_check
      _
    $region35: #{basic_cl4rec_forward.1} parent=1 // pred_check_branch
      %1213 = sbr.rel (0) target = $region37
    $region36: #{basic_cl4rec_forward.1} parent=1 // pred_region
      _
    $region37: #{basic_cl4rec_forward.1} parent=1 // pred_fallthru
      _
    // Predicated region
    $region38: #{basic_cl4rec_forward.1} parent=1 // pred_check
      _
    $region39: #{basic_cl4rec_forward.1} parent=1 // pred_check_branch
      %1215 = sbr.rel (0) target = $region41
    $region40: #{basic_cl4rec_forward.1} parent=1 // pred_region
      _
    $region41: #{basic_cl4rec_forward.1} parent=1 // pred_fallthru
      _
    // Predicated region
    $region42: #{basic_cl4rec_forward.1} parent=1 // pred_check
      _
    $region43: #{basic_cl4rec_forward.1} parent=1 // pred_check_branch
      %1217 = sbr.rel (0) target = $region45
    $region44: #{basic_cl4rec_forward.1} parent=1 // pred_region
      %1219 = vsyncadd [#allocation3], 0
      %s1220 = sshll.u32 [#allocation2], 4
      %s1221 = int_to_ptr.vmem [resolvable:$true] %s1220
      %s1222 = sshll.u32 %s10, 4
      %s1223 = int_to_ptr.hbm [resolvable:$true] %s1222
      %1228 = dma.vmem_to_hbm [thread:$0]  %s1221, 256, %s1223, [#allocation3], 128, 128, 8
    $region45: #{basic_cl4rec_forward.1} parent=1 // pred_fallthru
      _
    // Predicated region
    $region46: #{basic_cl4rec_forward.1} parent=1 // pred_check
      _
    $region47: #{basic_cl4rec_forward.1} parent=1 // pred_check_branch
      %1230 = sbr.rel (0) target = $region49
    $region48: #{basic_cl4rec_forward.1} parent=1 // pred_region
      _
    $region49: #{basic_cl4rec_forward.1} parent=1 // pred_fallthru
      _
    // Predicated region
    $region50: #{basic_cl4rec_forward.1} parent=1 // pred_check
      _
    $region51: #{basic_cl4rec_forward.1} parent=1 // pred_check_branch
      %1232 = sbr.rel (0) target = $region53
    $region52: #{basic_cl4rec_forward.1} parent=1 // pred_region
      _
    $region53: #{basic_cl4rec_forward.1} parent=1 // pred_fallthru
      _
    // Predicated region
    $region54: #{basic_cl4rec_forward.1} parent=1 // pred_check
      _
    $region55: #{basic_cl4rec_forward.1} parent=1 // pred_check_branch
      %1234 = sbr.rel (0) target = $region57
    $region56: #{basic_cl4rec_forward.1} parent=1 // pred_region
      _
    $region57: #{basic_cl4rec_forward.1} parent=1 // pred_fallthru
      _
    // Predicated region
    $region58: #{basic_cl4rec_forward.1} parent=1 // pred_check
      _
    $region59: #{basic_cl4rec_forward.1} parent=1 // pred_check_branch
      %1236 = sbr.rel (0) target = $region61
    $region60: #{basic_cl4rec_forward.1} parent=1 // pred_region
      %1238 = dma.done [#allocation3], 256
    $region61: #{basic_cl4rec_forward.1} parent=1 // pred_fallthru
      _
    %1239 = vsyncpa [#allocation3], 1

</llo_original>
